<compile_context>
chip_gen: v7x
topology: tpu7x:2x2x1
jax: 0.10.0
libtpu: 0.0.40
codegen_flags: <defaults>
</compile_context>

<pallas_src>
import functools

import jax
import jax.numpy as jnp
from jax.experimental import pallas as pl
from jax.experimental.pallas import tpu as pltpu


VMEM_LIMIT = 48 * 1024 * 1024   # conservative budget for all TPU generations
NEG_INF = -1e30                 # additive causal-mask value (kept on the f32 path)
APPROX_RECIP = True             # EUP reciprocal in softmax normalisation (inference)


# --------------------------------------------------------------------------
# Helpers
# --------------------------------------------------------------------------
def _round_up(x, m):
    return (x + m - 1) // m * m


def _tile(n, pref):
    """Use `pref` as tile if it divides n, else fall back to the full extent."""
    return pref if (n >= pref and n % pref == 0) else n


def _layernorm(x, g, b, eps=1e-5):
    mu = jnp.mean(x, axis=-1, keepdims=True)
    var = jnp.mean((x - mu) ** 2, axis=-1, keepdims=True)
    return (x - mu) * jax.lax.rsqrt(var + eps) * g + b


def _gelu_exact(x):
    # PyTorch nn.GELU() default (erf based), computed in f32 on one row tile.
    return 0.5 * x * (1.0 + jax.lax.erf(x * 0.7071067811865476))


def _full2(arr):
    """Full-extent BlockSpec for a weight/bias used under a 2-axis grid."""
    nd = arr.ndim
    return pl.BlockSpec(arr.shape, lambda b, r, _nd=nd: (0,) * _nd)


# --------------------------------------------------------------------------
# Kernel 1: LN1 + QKV projection, head-major output (B, H, T, hs)
# --------------------------------------------------------------------------
def qkv_kernel(x_ref, g_ref, b_ref, wq_ref, wk_ref, wv_ref,
               q_ref, k_ref, v_ref, *, n_head):
    xn = _layernorm(x_ref[0].astype(jnp.float32), g_ref[...], b_ref[...])
    xn = xn.astype(jnp.bfloat16)
    # Per-head 2-D matmuls write q/k/v directly in (H, tq, hs) layout; no lane
    # slicing / stacking of the activation.
    # TODO(synk): pack 2 heads per matmul to better fill the 256-wide MXU on v6e/v7x.
    for h in range(n_head):
        q_ref[0, h] = jnp.dot(xn, wq_ref[h],
                              preferred_element_type=jnp.float32).astype(q_ref.dtype)
        k_ref[0, h] = jnp.dot(xn, wk_ref[h],
                              preferred_element_type=jnp.float32).astype(k_ref.dtype)
        v_ref[0, h] = jnp.dot(xn, wv_ref[h],
                              preferred_element_type=jnp.float32).astype(v_ref.dtype)


# --------------------------------------------------------------------------
# Kernel 2: flash-style causal attention, grid (B, H, q-tile, kv-tile)
# --------------------------------------------------------------------------
def flash_attn_kernel(q_ref, k_ref, v_ref, o_ref, m_sc, l_sc, acc_sc,
                      *, tq, tk, scale):
    ki = pl.program_id(3)
    nk = pl.num_programs(3)
    q_start = pl.program_id(2) * tq
    k_start = ki * tk

    @pl.when(ki == 0)
    def _():
        m_sc[...] = jnp.full(m_sc.shape, NEG_INF, m_sc.dtype)
        l_sc[...] = jnp.zeros(l_sc.shape, l_sc.dtype)
        acc_sc[...] = jnp.zeros(acc_sc.shape, acc_sc.dtype)

    # Causal block skipping: kv tiles strictly above the diagonal do nothing.
    @pl.when(k_start <= q_start + tq - 1)
    def _():
        q = q_ref[0, 0]                                   # (tq, hs) bf16
        k = k_ref[0, 0]                                   # (tk, hs) bf16
        v = v_ref[0, 0]                                   # (tk, hs) bf16
        s = jax.lax.dot_general(q, k, (((1,), (1,)), ((), ())),
                                preferred_element_type=jnp.float32) * scale
        row = jax.lax.broadcasted_iota(jnp.int32, (tq, tk), 0) + q_start
        col = jax.lax.broadcasted_iota(jnp.int32, (tq, tk), 1) + k_start
        s = jnp.where(row >= col, s, NEG_INF)             # tile-local causal bias

        m_prev = m_sc[...]
        m_new = jnp.maximum(m_prev, jnp.max(s, axis=-1, keepdims=True))
        alpha = jnp.exp(m_prev - m_new)
        p = jnp.exp(s - m_new)
        l_sc[...] = alpha * l_sc[...] + jnp.sum(p, axis=-1, keepdims=True)
        acc_sc[...] = alpha * acc_sc[...] + jax.lax.dot_general(
            p.astype(jnp.bfloat16), v, (((1,), (0,)), ((), ())),
            preferred_element_type=jnp.float32)
        m_sc[...] = m_new

    @pl.when(ki == nk - 1)
    def _():
        if APPROX_RECIP:
            inv = pl.reciprocal(l_sc[...], approx=True)
        else:
            inv = 1.0 / l_sc[...]
        o_ref[0, 0] = (acc_sc[...] * inv).astype(o_ref.dtype)


# --------------------------------------------------------------------------
# Kernel 3: c_proj + residual + LN2 + MLP + residual, row-tiled
# --------------------------------------------------------------------------
def proj_mlp_kernel(o_ref, x_ref, wp_ref, bp_ref, ln2g_ref, ln2b_ref,
                    w1_ref, b1_ref, w2_ref, b2_ref, out_ref, *, n_head):
    _, tr, C = x_ref.shape
    # c_proj applied per head, accumulated straight into one (tr, C) f32 tile.
    acc = jnp.zeros((tr, C), jnp.float32) + bp_ref[...]
    for h in range(n_head):
        acc = acc + jnp.dot(o_ref[0, h], wp_ref[h],
                            preferred_element_type=jnp.float32)
    x1 = x_ref[0].astype(jnp.float32) + acc               # residual (dropout = identity)

    h2 = _layernorm(x1, ln2g_ref[...], ln2b_ref[...]).astype(jnp.bfloat16)
    h2 = jnp.dot(h2, w1_ref[...], preferred_element_type=jnp.float32) + b1_ref[...]
    h2 = _gelu_exact(h2).astype(jnp.bfloat16)
    h2 = jnp.dot(h2, w2_ref[...], preferred_element_type=jnp.float32) + b2_ref[...]
    out_ref[0] = (x1 + h2).astype(out_ref.dtype)          # residual (dropout = identity)
    # TODO(synk): K-tile w_fc1/w_fc2 and stream w_proj per head for v7x's 64 MiB VMEM
    # at very large n_embd; weights are kept resident here.


def run_block(x, p, n_head):
    """One transformer block on the bf16 residual stream x: (B, T, C) -> (B, T, C)."""
    B, T, C = x.shape
    hs = C // n_head
    tq = _tile(T, 128)
    tk = _tile(T, 128)
    tr = _tile(T, 128)

    # ---- 1) LN1 + QKV projection --------------------------------------------
    head_shape = jax.ShapeDtypeStruct((B, n_head, T, hs), jnp.bfloat16)
    q, k, v = pl.pallas_call(
        functools.partial(qkv_kernel, n_head=n_head),
        out_shape=(head_shape, head_shape, head_shape),
        grid=(B, T // tq),
        in_specs=[
            pl.BlockSpec((1, tq, C), lambda b, r: (b, r, 0)),
            _full2(p["ln1_g"]), _full2(p["ln1_b"]),
            _full2(p["w_q"]), _full2(p["w_k"]), _full2(p["w_v"]),
        ],
        out_specs=(pl.BlockSpec((1, n_head, tq, hs), lambda b, r: (b, 0, r, 0)),) * 3,
        compiler_params=pltpu.CompilerParams(
            dimension_semantics=("parallel", "parallel"),
            vmem_limit_bytes=VMEM_LIMIT),
    )(x, p["ln1_g"], p["ln1_b"], p["w_q"], p["w_k"], p["w_v"])

    # ---- 2) flash attention --------------------------------------------------
    o = pl.pallas_call(
        functools.partial(flash_attn_kernel, tq=tq, tk=tk, scale=1.0 / (hs ** 0.5)),
        out_shape=jax.ShapeDtypeStruct((B, n_head, T, hs), jnp.bfloat16),
        grid=(B, n_head, T // tq, T // tk),
        in_specs=[
            pl.BlockSpec((1, 1, tq, hs), lambda b, h, qi, ki: (b, h, qi, 0)),
            pl.BlockSpec((1, 1, tk, hs), lambda b, h, qi, ki: (b, h, ki, 0)),
            pl.BlockSpec((1, 1, tk, hs), lambda b, h, qi, ki: (b, h, ki, 0)),
        ],
        out_specs=pl.BlockSpec((1, 1, tq, hs), lambda b, h, qi, ki: (b, h, qi, 0)),
        scratch_shapes=[pltpu.VMEM((tq, 1), jnp.float32),
                        pltpu.VMEM((tq, 1), jnp.float32),
                        pltpu.VMEM((tq, hs), jnp.float32)],
        compiler_params=pltpu.CompilerParams(
            dimension_semantics=("parallel", "parallel", "parallel", "arbitrary"),
            vmem_limit_bytes=VMEM_LIMIT),
    )(q, k, v)

    # ---- 3) c_proj + residual + LN2 + MLP + residual -------------------------
    out = pl.pallas_call(
        functools.partial(proj_mlp_kernel, n_head=n_head),
        out_shape=jax.ShapeDtypeStruct((B, T, C), jnp.bfloat16),
        grid=(B, T // tr),
        in_specs=[
            pl.BlockSpec((1, n_head, tr, hs), lambda b, r: (b, 0, r, 0)),
            pl.BlockSpec((1, tr, C), lambda b, r: (b, r, 0)),
            _full2(p["w_proj"]), _full2(p["b_proj"]),
            _full2(p["ln2_g"]), _full2(p["ln2_b"]),
            _full2(p["w_fc1"]), _full2(p["b_fc1"]),
            _full2(p["w_fc2"]), _full2(p["b_fc2"]),
        ],
        out_specs=pl.BlockSpec((1, tr, C), lambda b, r: (b, r, 0)),
        compiler_params=pltpu.CompilerParams(
            dimension_semantics=("parallel", "parallel"),
            vmem_limit_bytes=VMEM_LIMIT),
    )(o, x, p["w_proj"], p["b_proj"], p["ln2_g"], p["ln2_b"],
      p["w_fc1"], p["b_fc1"], p["w_fc2"], p["b_fc2"])
    return out


# --------------------------------------------------------------------------
# Kernel 4: final LayerNorm + lm_head, tiled over (rows, vocab)
# --------------------------------------------------------------------------
def head_kernel(x_ref, g_ref, b_ref, w_ref, bh_ref, o_ref, xn_sc):
    # LN of each row tile is computed once (at the first vocab tile) and cached.
    @pl.when(pl.program_id(1) == 0)
    def _():
        xn_sc[...] = _layernorm(x_ref[...].astype(jnp.float32),
                                g_ref[...], b_ref[...]).astype(jnp.bfloat16)
    o_ref[...] = (jnp.dot(xn_sc[...], w_ref[...],
                          preferred_element_type=jnp.float32) + bh_ref[...])


def run_head(x_flat, lnf_g, lnf_b, w_head, b_head, vocab_size):
    """x_flat: (BT, C) bf16; w_head: (C, V_pad) bf16 (padded at init) -> (BT, V)."""
    BT, C = x_flat.shape
    Vp = w_head.shape[1]
    tn = 1024 if Vp >= 1024 else Vp
    tm = 256 if BT >= 256 else BT
    BTp = _round_up(BT, tm)
    if BTp != BT:
        x_flat = jnp.pad(x_flat, ((0, BTp - BT), (0, 0)))

    out = pl.pallas_call(
        head_kernel,
        out_shape=jax.ShapeDtypeStruct((BTp, Vp), jnp.float32),
        grid=(BTp // tm, Vp // tn),
        in_specs=[
            pl.BlockSpec((tm, C), lambda i, j: (i, 0)),
            pl.BlockSpec((1, C), lambda i, j: (0, 0)),
            pl.BlockSpec((1, C), lambda i, j: (0, 0)),
            pl.BlockSpec((C, tn), lambda i, j: (0, j)),
            pl.BlockSpec((1, tn), lambda i, j: (0, j)),
        ],
        out_specs=pl.BlockSpec((tm, tn), lambda i, j: (i, j)),
        scratch_shapes=[pltpu.VMEM((tm, C), jnp.bfloat16)],
        compiler_params=pltpu.CompilerParams(
            dimension_semantics=("parallel", "arbitrary"),
            vmem_limit_bytes=VMEM_LIMIT),
    )(x_flat, lnf_g, lnf_b, w_head, b_head)
    return out[:BT, :vocab_size]


# --------------------------------------------------------------------------
# Parameters & full model
# --------------------------------------------------------------------------
def init_params(key, block_size, vocab_size, n_embd, n_head, n_layer):
    hs = n_embd // n_head
    ks = iter(jax.random.split(key, 8 * n_layer + 8))
    std = 0.02

    def w(shape, dtype=jnp.bfloat16):
        return (std * jax.random.normal(next(ks), shape, jnp.float32)).astype(dtype)

    # lm_head weight / bias padded to the vocab tile multiple once, at init time.
    v_pad = _round_up(vocab_size, 1024) if vocab_size >= 1024 else vocab_size
    w_head = w((n_embd, vocab_size))
    if v_pad != vocab_size:
        w_head = jnp.pad(w_head, ((0, 0), (0, v_pad - vocab_size)))
    b_head = jnp.zeros((1, v_pad), jnp.float32)

    params = {
        "wte": w((vocab_size, n_embd), jnp.float32),
        "wpe": w((block_size, n_embd), jnp.float32),
        "lnf_g": jnp.ones((1, n_embd), jnp.float32),
        "lnf_b": jnp.zeros((1, n_embd), jnp.float32),
        "w_head": w_head,                              # (C, V_pad) bf16, pre-transposed
        "b_head": b_head,
        "blocks": [],
    }
    for _ in range(n_layer):
        params["blocks"].append({
            "ln1_g": jnp.ones((1, n_embd), jnp.float32),
            "ln1_b": jnp.zeros((1, n_embd), jnp.float32),
            # c_attn (bias=False), stored head-major: (H, C, hs) per q/k/v
            "w_q": w((n_head, n_embd, hs)),
            "w_k": w((n_head, n_embd, hs)),
            "w_v": w((n_head, n_embd, hs)),
            # c_proj stored per head: (H, hs, C) plus bias
            "w_proj": w((n_head, hs, n_embd)),
            "b_proj": jnp.zeros((1, n_embd), jnp.float32),
            "ln2_g": jnp.ones((1, n_embd), jnp.float32),
            "ln2_b": jnp.zeros((1, n_embd), jnp.float32),
            "w_fc1": w((n_embd, 4 * n_embd)),          # (C, 4C)
            "b_fc1": jnp.zeros((1, 4 * n_embd), jnp.float32),
            "w_fc2": w((4 * n_embd, n_embd)),          # (4C, C)
            "b_fc2": jnp.zeros((1, n_embd), jnp.float32),
        })
    return params


def nanogpt_forward(idx, params, n_head):
    # TODO(synk): targets / cross-entropy loss path not implemented (targets=None).
    B, T = idx.shape
    tok_emb = jnp.take(params["wte"], idx, axis=0)          # (B, T, C) gather (plain JAX)
    pos_emb = params["wpe"][:T]                             # (T, C)
    x = (tok_emb + pos_emb[None, :, :]).astype(jnp.bfloat16)  # bf16 residual stream

    for blk in params["blocks"]:
        x = run_block(x, blk, n_head)

    B_, T_, C = x.shape
    vocab_size = params["wte"].shape[0]
    logits = run_head(x.reshape(B_ * T_, C),
                      params["lnf_g"], params["lnf_b"],
                      params["w_head"], params["b_head"], vocab_size)
    return logits.reshape(B_, T_, vocab_size)


# --------------------------------------------------------------------------
if __name__ == "__main__":
    block_size, vocab_size = 8, 64
    n_embd, n_head, n_layer, dropout = 32, 4, 2, 0.1
    B, T = 2, 8

    key = jax.random.PRNGKey(0)
    k_params, k_idx = jax.random.split(key)
    params = init_params(k_params, block_size, vocab_size, n_embd, n_head, n_layer)
    idx = jax.random.randint(k_idx, (B, T), 0, vocab_size, dtype=jnp.int32)

    logits = nanogpt_forward(idx, params, n_head)
    logits = jax.block_until_ready(logits)
    assert logits.shape == (B, T, vocab_size), logits.shape
    assert bool(jnp.all(jnp.isfinite(logits)))
    print("KERNEL_OK")
</pallas_src>

<mosaic_0001>
module attributes {stable_mosaic.version = 11 : i64} {
  func.func @qkv_kernel(%arg0: i32, %arg1: i32, %arg2: memref<1x8x32xbf16, #tpu.memory_space<vmem>>, %arg3: memref<1x32xf32, #tpu.memory_space<vmem>>, %arg4: memref<1x32xf32, #tpu.memory_space<vmem>>, %arg5: memref<4x32x8xbf16, #tpu.memory_space<vmem>>, %arg6: memref<4x32x8xbf16, #tpu.memory_space<vmem>>, %arg7: memref<4x32x8xbf16, #tpu.memory_space<vmem>>, %arg8: memref<1x4x8x8xbf16, #tpu.memory_space<vmem>>, %arg9: memref<1x4x8x8xbf16, #tpu.memory_space<vmem>>, %arg10: memref<1x4x8x8xbf16, #tpu.memory_space<vmem>>) attributes {dimension_semantics = [#tpu.dimension_semantics<parallel>, #tpu.dimension_semantics<parallel>], iteration_bounds = array<i64: 2, 1>, scalar_prefetch = 0 : i64, scratch_operands = 0 : i64, tpu.core_type = #tpu.core_type<tc>, window_params = [{transform_indices = @transform_0, window_bounds = array<i64: 1, 8, 32>}, {pipeline_mode = #tpu.pipeline_mode<synchronous>, transform_indices = @transform_1, window_bounds = array<i64: 1, 32>}, {pipeline_mode = #tpu.pipeline_mode<synchronous>, transform_indices = @transform_2, window_bounds = array<i64: 1, 32>}, {pipeline_mode = #tpu.pipeline_mode<synchronous>, transform_indices = @transform_3, window_bounds = array<i64: 4, 32, 8>}, {pipeline_mode = #tpu.pipeline_mode<synchronous>, transform_indices = @transform_4, window_bounds = array<i64: 4, 32, 8>}, {pipeline_mode = #tpu.pipeline_mode<synchronous>, transform_indices = @transform_5, window_bounds = array<i64: 4, 32, 8>}, {transform_indices = @transform_6, window_bounds = array<i64: 1, 4, 8, 8>}, {transform_indices = @transform_7, window_bounds = array<i64: 1, 4, 8, 8>}, {transform_indices = @transform_8, window_bounds = array<i64: 1, 4, 8, 8>}]} {
    %c0 = arith.constant 0 : index
    %c0_0 = arith.constant 0 : index
    %c0_1 = arith.constant 0 : index
    %0 = vector.load %arg2[%c0, %c0_0, %c0_1] : memref<1x8x32xbf16, #tpu.memory_space<vmem>>, vector<1x8x32xbf16>
    %1 = vector.shape_cast %0 : vector<1x8x32xbf16> to vector<8x32xbf16>
    %2 = arith.extf %1 : vector<8x32xbf16> to vector<8x32xf32>
    %c0_2 = arith.constant 0 : index
    %c0_3 = arith.constant 0 : index
    %3 = vector.load %arg3[%c0_2, %c0_3] : memref<1x32xf32, #tpu.memory_space<vmem>>, vector<1x32xf32>
    %c0_4 = arith.constant 0 : index
    %c0_5 = arith.constant 0 : index
    %4 = vector.load %arg4[%c0_4, %c0_5] : memref<1x32xf32, #tpu.memory_space<vmem>>, vector<1x32xf32>
    %cst = arith.constant dense<0.000000e+00> : vector<8xf32>
    %5 = vector.multi_reduction <add>, %2, %cst [1] : vector<8x32xf32> to vector<8xf32>
    %6 = vector.shape_cast %5 : vector<8xf32> to vector<8x1xf32>
    %cst_6 = arith.constant 3.200000e+01 : f32
    %7 = vector.broadcast %cst_6 : f32 to vector<8x1xf32>
    %8 = arith.divf %6, %7 : vector<8x1xf32>
    %9 = vector.broadcast %8 : vector<8x1xf32> to vector<8x32xf32>
    %10 = arith.subf %2, %9 : vector<8x32xf32>
    %11 = arith.mulf %10, %10 : vector<8x32xf32>
    %cst_7 = arith.constant dense<0.000000e+00> : vector<8xf32>
    %12 = vector.multi_reduction <add>, %11, %cst_7 [1] : vector<8x32xf32> to vector<8xf32>
    %13 = vector.shape_cast %12 : vector<8xf32> to vector<8x1xf32>
    %cst_8 = arith.constant 3.200000e+01 : f32
    %14 = vector.broadcast %cst_8 : f32 to vector<8x1xf32>
    %15 = arith.divf %13, %14 : vector<8x1xf32>
    %16 = vector.broadcast %8 : vector<8x1xf32> to vector<8x32xf32>
    %17 = arith.subf %2, %16 : vector<8x32xf32>
    %cst_9 = arith.constant 9.99999974E-6 : f32
    %18 = vector.broadcast %cst_9 : f32 to vector<8x1xf32>
    %19 = arith.addf %15, %18 : vector<8x1xf32>
    %20 = math.rsqrt %19 : vector<8x1xf32>
    %21 = vector.broadcast %20 : vector<8x1xf32> to vector<8x32xf32>
    %22 = arith.mulf %17, %21 : vector<8x32xf32>
    %23 = vector.broadcast %3 : vector<1x32xf32> to vector<8x32xf32>
    %24 = arith.mulf %22, %23 : vector<8x32xf32>
    %25 = vector.broadcast %4 : vector<1x32xf32> to vector<8x32xf32>
    %26 = arith.addf %24, %25 : vector<8x32xf32>
    %27 = arith.truncf %26 : vector<8x32xf32> to vector<8x32xbf16>
    %c0_10 = arith.constant 0 : index
    %c0_11 = arith.constant 0 : index
    %c0_12 = arith.constant 0 : index
    %28 = vector.load %arg5[%c0_10, %c0_11, %c0_12] : memref<4x32x8xbf16, #tpu.memory_space<vmem>>, vector<1x32x8xbf16>
    %29 = vector.shape_cast %28 : vector<1x32x8xbf16> to vector<32x8xbf16>
    %cst_13 = arith.constant dense<0.000000e+00> : vector<8x8xf32>
    %30 = tpu.matmul %27, %29, %cst_13 {dimension_numbers = #tpu.dot_dimension_numbers<[1], [0], [0], [1], [0, 0, 1, 1], [], []>} : vector<8x32xbf16>, vector<32x8xbf16>, vector<8x8xf32> -> vector<8x8xf32>
    %31 = arith.truncf %30 : vector<8x8xf32> to vector<8x8xbf16>
    %c0_14 = arith.constant 0 : index
    %c0_15 = arith.constant 0 : index
    %c0_16 = arith.constant 0 : index
    %c0_17 = arith.constant 0 : index
    %32 = vector.load %arg8[%c0_14, %c0_15, %c0_16, %c0_17] : memref<1x4x8x8xbf16, #tpu.memory_space<vmem>>, vector<1x1x8x8xbf16>
    %33 = vector.shape_cast %32 : vector<1x1x8x8xbf16> to vector<8x8xbf16>
    %34 = vector.shape_cast %31 : vector<8x8xbf16> to vector<1x1x8x8xbf16>
    tpu.vector_store %arg8[%c0_14, %c0_15, %c0_16, %c0_17], %34 {strides = array<i32>} : memref<1x4x8x8xbf16, #tpu.memory_space<vmem>>, vector<1x1x8x8xbf16>,
    %c0_18 = arith.constant 0 : index
    %c0_19 = arith.constant 0 : index
    %c0_20 = arith.constant 0 : index
    %35 = vector.load %arg6[%c0_18, %c0_19, %c0_20] : memref<4x32x8xbf16, #tpu.memory_space<vmem>>, vector<1x32x8xbf16>
    %36 = vector.shape_cast %35 : vector<1x32x8xbf16> to vector<32x8xbf16>
    %cst_21 = arith.constant dense<0.000000e+00> : vector<8x8xf32>
    %37 = tpu.matmul %27, %36, %cst_21 {dimension_numbers = #tpu.dot_dimension_numbers<[1], [0], [0], [1], [0, 0, 1, 1], [], []>} : vector<8x32xbf16>, vector<32x8xbf16>, vector<8x8xf32> -> vector<8x8xf32>
    %38 = arith.truncf %37 : vector<8x8xf32> to vector<8x8xbf16>
    %c0_22 = arith.constant 0 : index
    %c0_23 = arith.constant 0 : index
    %c0_24 = arith.constant 0 : index
    %c0_25 = arith.constant 0 : index
    %39 = vector.load %arg9[%c0_22, %c0_23, %c0_24, %c0_25] : memref<1x4x8x8xbf16, #tpu.memory_space<vmem>>, vector<1x1x8x8xbf16>
    %40 = vector.shape_cast %39 : vector<1x1x8x8xbf16> to vector<8x8xbf16>
    %41 = vector.shape_cast %38 : vector<8x8xbf16> to vector<1x1x8x8xbf16>
    tpu.vector_store %arg9[%c0_22, %c0_23, %c0_24, %c0_25], %41 {strides = array<i32>} : memref<1x4x8x8xbf16, #tpu.memory_space<vmem>>, vector<1x1x8x8xbf16>,
    %c0_26 = arith.constant 0 : index
    %c0_27 = arith.constant 0 : index
    %c0_28 = arith.constant 0 : index
    %42 = vector.load %arg7[%c0_26, %c0_27, %c0_28] : memref<4x32x8xbf16, #tpu.memory_space<vmem>>, vector<1x32x8xbf16>
    %43 = vector.shape_cast %42 : vector<1x32x8xbf16> to vector<32x8xbf16>
    %cst_29 = arith.constant dense<0.000000e+00> : vector<8x8xf32>
    %44 = tpu.matmul %27, %43, %cst_29 {dimension_numbers = #tpu.dot_dimension_numbers<[1], [0], [0], [1], [0, 0, 1, 1], [], []>} : vector<8x32xbf16>, vector<32x8xbf16>, vector<8x8xf32> -> vector<8x8xf32>
    %45 = arith.truncf %44 : vector<8x8xf32> to vector<8x8xbf16>
    %c0_30 = arith.constant 0 : index
    %c0_31 = arith.constant 0 : index
    %c0_32 = arith.constant 0 : index
    %c0_33 = arith.constant 0 : index
    %46 = vector.load %arg10[%c0_30, %c0_31, %c0_32, %c0_33] : memref<1x4x8x8xbf16, #tpu.memory_space<vmem>>, vector<1x1x8x8xbf16>
    %47 = vector.shape_cast %46 : vector<1x1x8x8xbf16> to vector<8x8xbf16>
    %48 = vector.shape_cast %45 : vector<8x8xbf16> to vector<1x1x8x8xbf16>
    tpu.vector_store %arg10[%c0_30, %c0_31, %c0_32, %c0_33], %48 {strides = array<i32>} : memref<1x4x8x8xbf16, #tpu.memory_space<vmem>>, vector<1x1x8x8xbf16>,
    %c1 = arith.constant 1 : index
    %c0_34 = arith.constant 0 : index
    %c0_35 = arith.constant 0 : index
    %49 = vector.load %arg5[%c1, %c0_34, %c0_35] : memref<4x32x8xbf16, #tpu.memory_space<vmem>>, vector<1x32x8xbf16>
    %50 = vector.shape_cast %49 : vector<1x32x8xbf16> to vector<32x8xbf16>
    %cst_36 = arith.constant dense<0.000000e+00> : vector<8x8xf32>
    %51 = tpu.matmul %27, %50, %cst_36 {dimension_numbers = #tpu.dot_dimension_numbers<[1], [0], [0], [1], [0, 0, 1, 1], [], []>} : vector<8x32xbf16>, vector<32x8xbf16>, vector<8x8xf32> -> vector<8x8xf32>
    %52 = arith.truncf %51 : vector<8x8xf32> to vector<8x8xbf16>
    %c0_37 = arith.constant 0 : index
    %c1_38 = arith.constant 1 : index
    %c0_39 = arith.constant 0 : index
    %c0_40 = arith.constant 0 : index
    %53 = vector.load %arg8[%c0_37, %c1_38, %c0_39, %c0_40] : memref<1x4x8x8xbf16, #tpu.memory_space<vmem>>, vector<1x1x8x8xbf16>
    %54 = vector.shape_cast %53 : vector<1x1x8x8xbf16> to vector<8x8xbf16>
    %55 = vector.shape_cast %52 : vector<8x8xbf16> to vector<1x1x8x8xbf16>
    tpu.vector_store %arg8[%c0_37, %c1_38, %c0_39, %c0_40], %55 {strides = array<i32>} : memref<1x4x8x8xbf16, #tpu.memory_space<vmem>>, vector<1x1x8x8xbf16>,
    %c1_41 = arith.constant 1 : index
    %c0_42 = arith.constant 0 : index
    %c0_43 = arith.constant 0 : index
    %56 = vector.load %arg6[%c1_41, %c0_42, %c0_43] : memref<4x32x8xbf16, #tpu.memory_space<vmem>>, vector<1x32x8xbf16>
    %57 = vector.shape_cast %56 : vector<1x32x8xbf16> to vector<32x8xbf16>
    %cst_44 = arith.constant dense<0.000000e+00> : vector<8x8xf32>
    %58 = tpu.matmul %27, %57, %cst_44 {dimension_numbers = #tpu.dot_dimension_numbers<[1], [0], [0], [1], [0, 0, 1, 1], [], []>} : vector<8x32xbf16>, vector<32x8xbf16>, vector<8x8xf32> -> vector<8x8xf32>
    %59 = arith.truncf %58 : vector<8x8xf32> to vector<8x8xbf16>
    %c0_45 = arith.constant 0 : index
    %c1_46 = arith.constant 1 : index
    %c0_47 = arith.constant 0 : index
    %c0_48 = arith.constant 0 : index
    %60 = vector.load %arg9[%c0_45, %c1_46, %c0_47, %c0_48] : memref<1x4x8x8xbf16, #tpu.memory_space<vmem>>, vector<1x1x8x8xbf16>
    %61 = vector.shape_cast %60 : vector<1x1x8x8xbf16> to vector<8x8xbf16>
    %62 = vector.shape_cast %59 : vector<8x8xbf16> to vector<1x1x8x8xbf16>
    tpu.vector_store %arg9[%c0_45, %c1_46, %c0_47, %c0_48], %62 {strides = array<i32>} : memref<1x4x8x8xbf16, #tpu.memory_space<vmem>>, vector<1x1x8x8xbf16>,
    %c1_49 = arith.constant 1 : index
    %c0_50 = arith.constant 0 : index
    %c0_51 = arith.constant 0 : index
    %63 = vector.load %arg7[%c1_49, %c0_50, %c0_51] : memref<4x32x8xbf16, #tpu.memory_space<vmem>>, vector<1x32x8xbf16>
    %64 = vector.shape_cast %63 : vector<1x32x8xbf16> to vector<32x8xbf16>
    %cst_52 = arith.constant dense<0.000000e+00> : vector<8x8xf32>
    %65 = tpu.matmul %27, %64, %cst_52 {dimension_numbers = #tpu.dot_dimension_numbers<[1], [0], [0], [1], [0, 0, 1, 1], [], []>} : vector<8x32xbf16>, vector<32x8xbf16>, vector<8x8xf32> -> vector<8x8xf32>
    %66 = arith.truncf %65 : vector<8x8xf32> to vector<8x8xbf16>
    %c0_53 = arith.constant 0 : index
    %c1_54 = arith.constant 1 : index
    %c0_55 = arith.constant 0 : index
    %c0_56 = arith.constant 0 : index
    %67 = vector.load %arg10[%c0_53, %c1_54, %c0_55, %c0_56] : memref<1x4x8x8xbf16, #tpu.memory_space<vmem>>, vector<1x1x8x8xbf16>
    %68 = vector.shape_cast %67 : vector<1x1x8x8xbf16> to vector<8x8xbf16>
    %69 = vector.shape_cast %66 : vector<8x8xbf16> to vector<1x1x8x8xbf16>
    tpu.vector_store %arg10[%c0_53, %c1_54, %c0_55, %c0_56], %69 {strides = array<i32>} : memref<1x4x8x8xbf16, #tpu.memory_space<vmem>>, vector<1x1x8x8xbf16>,
    %c2 = arith.constant 2 : index
    %c0_57 = arith.constant 0 : index
    %c0_58 = arith.constant 0 : index
    %70 = vector.load %arg5[%c2, %c0_57, %c0_58] : memref<4x32x8xbf16, #tpu.memory_space<vmem>>, vector<1x32x8xbf16>
    %71 = vector.shape_cast %70 : vector<1x32x8xbf16> to vector<32x8xbf16>
    %cst_59 = arith.constant dense<0.000000e+00> : vector<8x8xf32>
    %72 = tpu.matmul %27, %71, %cst_59 {dimension_numbers = #tpu.dot_dimension_numbers<[1], [0], [0], [1], [0, 0, 1, 1], [], []>} : vector<8x32xbf16>, vector<32x8xbf16>, vector<8x8xf32> -> vector<8x8xf32>
    %73 = arith.truncf %72 : vector<8x8xf32> to vector<8x8xbf16>
    %c0_60 = arith.constant 0 : index
    %c2_61 = arith.constant 2 : index
    %c0_62 = arith.constant 0 : index
    %c0_63 = arith.constant 0 : index
    %74 = vector.load %arg8[%c0_60, %c2_61, %c0_62, %c0_63] : memref<1x4x8x8xbf16, #tpu.memory_space<vmem>>, vector<1x1x8x8xbf16>
    %75 = vector.shape_cast %74 : vector<1x1x8x8xbf16> to vector<8x8xbf16>
    %76 = vector.shape_cast %73 : vector<8x8xbf16> to vector<1x1x8x8xbf16>
    tpu.vector_store %arg8[%c0_60, %c2_61, %c0_62, %c0_63], %76 {strides = array<i32>} : memref<1x4x8x8xbf16, #tpu.memory_space<vmem>>, vector<1x1x8x8xbf16>,
    %c2_64 = arith.constant 2 : index
    %c0_65 = arith.constant 0 : index
    %c0_66 = arith.constant 0 : index
    %77 = vector.load %arg6[%c2_64, %c0_65, %c0_66] : memref<4x32x8xbf16, #tpu.memory_space<vmem>>, vector<1x32x8xbf16>
    %78 = vector.shape_cast %77 : vector<1x32x8xbf16> to vector<32x8xbf16>
    %cst_67 = arith.constant dense<0.000000e+00> : vector<8x8xf32>
    %79 = tpu.matmul %27, %78, %cst_67 {dimension_numbers = #tpu.dot_dimension_numbers<[1], [0], [0], [1], [0, 0, 1, 1], [], []>} : vector<8x32xbf16>, vector<32x8xbf16>, vector<8x8xf32> -> vector<8x8xf32>
    %80 = arith.truncf %79 : vector<8x8xf32> to vector<8x8xbf16>
    %c0_68 = arith.constant 0 : index
    %c2_69 = arith.constant 2 : index
    %c0_70 = arith.constant 0 : index
    %c0_71 = arith.constant 0 : index
    %81 = vector.load %arg9[%c0_68, %c2_69, %c0_70, %c0_71] : memref<1x4x8x8xbf16, #tpu.memory_space<vmem>>, vector<1x1x8x8xbf16>
    %82 = vector.shape_cast %81 : vector<1x1x8x8xbf16> to vector<8x8xbf16>
    %83 = vector.shape_cast %80 : vector<8x8xbf16> to vector<1x1x8x8xbf16>
    tpu.vector_store %arg9[%c0_68, %c2_69, %c0_70, %c0_71], %83 {strides = array<i32>} : memref<1x4x8x8xbf16, #tpu.memory_space<vmem>>, vector<1x1x8x8xbf16>,
    %c2_72 = arith.constant 2 : index
    %c0_73 = arith.constant 0 : index
    %c0_74 = arith.constant 0 : index
    %84 = vector.load %arg7[%c2_72, %c0_73, %c0_74] : memref<4x32x8xbf16, #tpu.memory_space<vmem>>, vector<1x32x8xbf16>
    %85 = vector.shape_cast %84 : vector<1x32x8xbf16> to vector<32x8xbf16>
    %cst_75 = arith.constant dense<0.000000e+00> : vector<8x8xf32>
    %86 = tpu.matmul %27, %85, %cst_75 {dimension_numbers = #tpu.dot_dimension_numbers<[1], [0], [0], [1], [0, 0, 1, 1], [], []>} : vector<8x32xbf16>, vector<32x8xbf16>, vector<8x8xf32> -> vector<8x8xf32>
    %87 = arith.truncf %86 : vector<8x8xf32> to vector<8x8xbf16>
    %c0_76 = arith.constant 0 : index
    %c2_77 = arith.constant 2 : index
    %c0_78 = arith.constant 0 : index
    %c0_79 = arith.constant 0 : index
    %88 = vector.load %arg10[%c0_76, %c2_77, %c0_78, %c0_79] : memref<1x4x8x8xbf16, #tpu.memory_space<vmem>>, vector<1x1x8x8xbf16>
    %89 = vector.shape_cast %88 : vector<1x1x8x8xbf16> to vector<8x8xbf16>
    %90 = vector.shape_cast %87 : vector<8x8xbf16> to vector<1x1x8x8xbf16>
    tpu.vector_store %arg10[%c0_76, %c2_77, %c0_78, %c0_79], %90 {strides = array<i32>} : memref<1x4x8x8xbf16, #tpu.memory_space<vmem>>, vector<1x1x8x8xbf16>,
    %c3 = arith.constant 3 : index
    %c0_80 = arith.constant 0 : index
    %c0_81 = arith.constant 0 : index
    %91 = vector.load %arg5[%c3, %c0_80, %c0_81] : memref<4x32x8xbf16, #tpu.memory_space<vmem>>, vector<1x32x8xbf16>
    %92 = vector.shape_cast %91 : vector<1x32x8xbf16> to vector<32x8xbf16>
    %cst_82 = arith.constant dense<0.000000e+00> : vector<8x8xf32>
    %93 = tpu.matmul %27, %92, %cst_82 {dimension_numbers = #tpu.dot_dimension_numbers<[1], [0], [0], [1], [0, 0, 1, 1], [], []>} : vector<8x32xbf16>, vector<32x8xbf16>, vector<8x8xf32> -> vector<8x8xf32>
    %94 = arith.truncf %93 : vector<8x8xf32> to vector<8x8xbf16>
    %c0_83 = arith.constant 0 : index
    %c3_84 = arith.constant 3 : index
    %c0_85 = arith.constant 0 : index
    %c0_86 = arith.constant 0 : index
    %95 = vector.load %arg8[%c0_83, %c3_84, %c0_85, %c0_86] : memref<1x4x8x8xbf16, #tpu.memory_space<vmem>>, vector<1x1x8x8xbf16>
    %96 = vector.shape_cast %95 : vector<1x1x8x8xbf16> to vector<8x8xbf16>
    %97 = vector.shape_cast %94 : vector<8x8xbf16> to vector<1x1x8x8xbf16>
    tpu.vector_store %arg8[%c0_83, %c3_84, %c0_85, %c0_86], %97 {strides = array<i32>} : memref<1x4x8x8xbf16, #tpu.memory_space<vmem>>, vector<1x1x8x8xbf16>,
    %c3_87 = arith.constant 3 : index
    %c0_88 = arith.constant 0 : index
    %c0_89 = arith.constant 0 : index
    %98 = vector.load %arg6[%c3_87, %c0_88, %c0_89] : memref<4x32x8xbf16, #tpu.memory_space<vmem>>, vector<1x32x8xbf16>
    %99 = vector.shape_cast %98 : vector<1x32x8xbf16> to vector<32x8xbf16>
    %cst_90 = arith.constant dense<0.000000e+00> : vector<8x8xf32>
    %100 = tpu.matmul %27, %99, %cst_90 {dimension_numbers = #tpu.dot_dimension_numbers<[1], [0], [0], [1], [0, 0, 1, 1], [], []>} : vector<8x32xbf16>, vector<32x8xbf16>, vector<8x8xf32> -> vector<8x8xf32>
    %101 = arith.truncf %100 : vector<8x8xf32> to vector<8x8xbf16>
    %c0_91 = arith.constant 0 : index
    %c3_92 = arith.constant 3 : index
    %c0_93 = arith.constant 0 : index
    %c0_94 = arith.constant 0 : index
    %102 = vector.load %arg9[%c0_91, %c3_92, %c0_93, %c0_94] : memref<1x4x8x8xbf16, #tpu.memory_space<vmem>>, vector<1x1x8x8xbf16>
    %103 = vector.shape_cast %102 : vector<1x1x8x8xbf16> to vector<8x8xbf16>
    %104 = vector.shape_cast %101 : vector<8x8xbf16> to vector<1x1x8x8xbf16>
    tpu.vector_store %arg9[%c0_91, %c3_92, %c0_93, %c0_94], %104 {strides = array<i32>} : memref<1x4x8x8xbf16, #tpu.memory_space<vmem>>, vector<1x1x8x8xbf16>,
    %c3_95 = arith.constant 3 : index
    %c0_96 = arith.constant 0 : index
    %c0_97 = arith.constant 0 : index
    %105 = vector.load %arg7[%c3_95, %c0_96, %c0_97] : memref<4x32x8xbf16, #tpu.memory_space<vmem>>, vector<1x32x8xbf16>
    %106 = vector.shape_cast %105 : vector<1x32x8xbf16> to vector<32x8xbf16>
    %cst_98 = arith.constant dense<0.000000e+00> : vector<8x8xf32>
    %107 = tpu.matmul %27, %106, %cst_98 {dimension_numbers = #tpu.dot_dimension_numbers<[1], [0], [0], [1], [0, 0, 1, 1], [], []>} : vector<8x32xbf16>, vector<32x8xbf16>, vector<8x8xf32> -> vector<8x8xf32>
    %108 = arith.truncf %107 : vector<8x8xf32> to vector<8x8xbf16>
    %c0_99 = arith.constant 0 : index
    %c3_100 = arith.constant 3 : index
    %c0_101 = arith.constant 0 : index
    %c0_102 = arith.constant 0 : index
    %109 = vector.load %arg10[%c0_99, %c3_100, %c0_101, %c0_102] : memref<1x4x8x8xbf16, #tpu.memory_space<vmem>>, vector<1x1x8x8xbf16>
    %110 = vector.shape_cast %109 : vector<1x1x8x8xbf16> to vector<8x8xbf16>
    %111 = vector.shape_cast %108 : vector<8x8xbf16> to vector<1x1x8x8xbf16>
    tpu.vector_store %arg10[%c0_99, %c3_100, %c0_101, %c0_102], %111 {strides = array<i32>} : memref<1x4x8x8xbf16, #tpu.memory_space<vmem>>, vector<1x1x8x8xbf16>,
    return
  }
  func.func @transform_0(%arg0: i32, %arg1: i32) -> (i32, i32, i32) {
    %c0_i32 = arith.constant 0 : i32
    %c0_i32_0 = arith.constant 0 : i32
    return %arg0, %arg1, %c0_i32 : i32, i32, i32
  }
  func.func @transform_1(%arg0: i32, %arg1: i32) -> (i32, i32) {
    %c0_i32 = arith.constant 0 : i32
    %c0_i32_0 = arith.constant 0 : i32
    %c0_i32_1 = arith.constant 0 : i32
    return %c0_i32, %c0_i32_0 : i32, i32
  }
  func.func @transform_2(%arg0: i32, %arg1: i32) -> (i32, i32) {
    %c0_i32 = arith.constant 0 : i32
    %c0_i32_0 = arith.constant 0 : i32
    %c0_i32_1 = arith.constant 0 : i32
    return %c0_i32, %c0_i32_0 : i32, i32
  }
  func.func @transform_3(%arg0: i32, %arg1: i32) -> (i32, i32, i32) {
    %c0_i32 = arith.constant 0 : i32
    %c0_i32_0 = arith.constant 0 : i32
    %c0_i32_1 = arith.constant 0 : i32
    %c0_i32_2 = arith.constant 0 : i32
    return %c0_i32, %c0_i32_0, %c0_i32_1 : i32, i32, i32
  }
  func.func @transform_4(%arg0: i32, %arg1: i32) -> (i32, i32, i32) {
    %c0_i32 = arith.constant 0 : i32
    %c0_i32_0 = arith.constant 0 : i32
    %c0_i32_1 = arith.constant 0 : i32
    %c0_i32_2 = arith.constant 0 : i32
    return %c0_i32, %c0_i32_0, %c0_i32_1 : i32, i32, i32
  }
  func.func @transform_5(%arg0: i32, %arg1: i32) -> (i32, i32, i32) {
    %c0_i32 = arith.constant 0 : i32
    %c0_i32_0 = arith.constant 0 : i32
    %c0_i32_1 = arith.constant 0 : i32
    %c0_i32_2 = arith.constant 0 : i32
    return %c0_i32, %c0_i32_0, %c0_i32_1 : i32, i32, i32
  }
  func.func @transform_6(%arg0: i32, %arg1: i32) -> (i32, i32, i32, i32) {
    %c0_i32 = arith.constant 0 : i32
    %c0_i32_0 = arith.constant 0 : i32
    %c0_i32_1 = arith.constant 0 : i32
    return %arg0, %c0_i32, %arg1, %c0_i32_0 : i32, i32, i32, i32
  }
  func.func @transform_7(%arg0: i32, %arg1: i32) -> (i32, i32, i32, i32) {
    %c0_i32 = arith.constant 0 : i32
    %c0_i32_0 = arith.constant 0 : i32
    %c0_i32_1 = arith.constant 0 : i32
    return %arg0, %c0_i32, %arg1, %c0_i32_0 : i32, i32, i32, i32
  }
  func.func @transform_8(%arg0: i32, %arg1: i32) -> (i32, i32, i32, i32) {
    %c0_i32 = arith.constant 0 : i32
    %c0_i32_0 = arith.constant 0 : i32
    %c0_i32_1 = arith.constant 0 : i32
    return %arg0, %c0_i32, %arg1, %c0_i32_0 : i32, i32, i32, i32
  }
}

</mosaic_0001>

<llo_original>
// kernel: tpu_custom_call.1
$region0: #{tpu_custom_call.1}
  #allocation0 [shape = 'u32[]', space=smem, size = 0x4, offset = 0x4, fixed_abs, tag = 'smem constant byte address 0x4 - core index']
  #allocation1 [shape = 'u32[144,128]{1,0:T(1,128)}', space=vmem, size = 0x12000, scoped, tag = 'internal scratch']
  %s0 = inlined_call_operand.vmem [shape: bf16[2,8,32], index: 0, kind: input, shape index: {}]
  %s1 = inlined_call_operand.vmem [shape: f32[1,32], index: 1, kind: input, shape index: {}]
  %s2 = inlined_call_operand.vmem [shape: f32[1,32], index: 2, kind: input, shape index: {}]
  %s3 = inlined_call_operand.vmem [shape: bf16[4,32,8], index: 3, kind: input, shape index: {}]
  %s4 = inlined_call_operand.vmem [shape: bf16[4,32,8], index: 4, kind: input, shape index: {}]
  %s5 = inlined_call_operand.vmem [shape: bf16[4,32,8], index: 5, kind: input, shape index: {}]
  %s6 = inlined_call_operand.hbm [shape: bf16[2,4,8,8], index: 6, kind: output, shape index: {0}]
  %s7 = inlined_call_operand.hbm [shape: bf16[2,4,8,8], index: 7, kind: output, shape index: {1}]
  %s8 = inlined_call_operand.hbm [shape: bf16[2,4,8,8], index: 8, kind: output, shape index: {2}]
  %9 = xla_tuple %s6, %s7, %s8
  %s10 = sld [smem:[#allocation0]]
  $region73: #{tpu_custom_call.1} parent=0
    _
  %s12 = ssub.s32 1, %s10
  %s13 = scalar_select 0, %s12, %s10
  $region1: #{tpu_custom_call.1} parent=0
    #allocation2 [shape = 'u8[16384]{0}', space=vmem, size = 0x4000, scoped, tag = 'output window, operand 0']
    #allocation3 [shape = 's32[2]{0}', space=sflag, size = 0x8, scoped, tag = 'scoped memory for tpu_custom_call.1']
    #allocation4 [shape = 'u8[16384]{0}', space=vmem, size = 0x4000, scoped, tag = 'output window, operand 1']
    #allocation5 [shape = 's32[2]{0}', space=sflag, size = 0x8, scoped, tag = 'scoped memory for tpu_custom_call.1']
    #allocation6 [shape = 'u8[16384]{0}', space=vmem, size = 0x4000, scoped, tag = 'output window, operand 2']
    %14 = vsyncpa [#allocation3], 0
    %s15 = scalar_lea.sflag [#allocation3], 1
    %16 = vsyncpa %s15, 0
    %17 = vsyncpa [#allocation5], 0
    %s18 = scalar_lea.sflag [#allocation5], 1
    %19 = vsyncpa %s18, 0
    loop: start=0, step=1, limit=4
    $region2: #{tpu_custom_call.1} parent=1 // loop_pre_header
      _
    $region3: #{tpu_custom_call.1} parent=1 // loop_header
      %s21 = sphi 0, %s25
      %p22 = scmp.ge.s32.totalorder %s21, 4
      %s28 = sphi 0, %s40
      %s29 = sphi 0, %s36
      %s30 = sphi 0, %s28
      %s31 = sphi 0, %s29
      %s32 = sphi 0, %s30
      %s33 = sphi 0, %s31
      %s45 = sphi 0, %s47
      %s48 = sphi 0, %s45
      %s49 = sphi 0, %s48
      %s65 = sphi 0, %s49
      %s69 = sphi 0, %s69
      %s71 = sphi 0, %s69
      %s72 = sphi 0, %s71
      %s86 = sphi 0, %s72
      %s90 = sphi 0, %s90
      %s92 = sphi 0, %s90
      %s93 = sphi 0, %s92
      %s107 = sphi 0, %s93
      %s111 = sphi 0, %s111
      %s113 = sphi 0, %s111
      %s114 = sphi 0, %s113
      %s128 = sphi 0, %s114
      %s132 = sphi 0, %s132
      %s134 = sphi 0, %s132
      %s135 = sphi 0, %s134
      %s149 = sphi 0, %s135
      %s153 = sphi 0, %s153
      %s155 = sphi 0, %s153
      %s156 = sphi 0, %s155
      %s170 = sphi 0, %s156
      %s178 = sphi 0, %s180
      %s181 = sphi 0, %s178
      %s182 = sphi 0, %s181
      %s198 = sphi 0, %s182
      %s206 = sphi 0, %s208
      %s209 = sphi 0, %s206
      %s210 = sphi 0, %s209
      %s226 = sphi 0, %s210
      %s234 = sphi 0, %s236
      %s237 = sphi 0, %s234
      %s238 = sphi 0, %s237
      %s254 = sphi 0, %s238
    $region4: #{tpu_custom_call.1} parent=1 // loop_header_branch
      %24 = sbr.rel (%p22) target = $region8
    $region5: #{tpu_custom_call.1} parent=1 // loop_body
      %s26 = ssub.s32 %s21, 1
      %s27 = ssub.s32 %s21, 2
      %s34 = sadd.s32 1, %s29
      %p35 = scmp.ge.s32.totalorder %s34, 1
      %s36 = scalar_select %p35, 0, %s34
      %s37 = sadd.s32 1, %s28
      %s38 = scalar_select %p35, %s37, %s28
      %p39 = scmp.ge.s32.totalorder %s38, 2
      %s40 = scalar_select %p39, 0, %s38
      %s41 = ssub.s32 %s28, %s40
      %s42 = ssub.s32 %s29, %s36
      %s43 = sor.u32 %s41, %s42
      %p44 = scmp.eq.s32.totalorder %s43, 0
      %s46 = sadd.s32 %s45, 1
      %s47 = scalar_select %p44, %s45, %s46
      %p50 = pneg %p44
      %p51 = scmp.eq.s32.totalorder %s21, 1
      %p52 = por %p50, %p51
      %p53 = scmp.ne.s32.totalorder %s45, %s48
      %p54 = scmp.eq.s32.totalorder %s21, 0
      %p55 = por %p53, %p54
      %p56 = scmp.ne.s32.totalorder %s45, %s48
      %p57 = scmp.eq.s32.totalorder %s26, 1
      %p58 = por %p56, %p57
      %p59 = scmp.ne.s32.totalorder %s48, %s49
      %p60 = scmp.eq.s32.totalorder %s26, 0
      %p61 = por %p59, %p60
      %p62 = scmp.ne.s32.totalorder %s48, %s49
      %p63 = scmp.eq.s32.totalorder %s27, 1
      %p64 = por %p62, %p63
      %p66 = scmp.ne.s32.totalorder %s49, %s65
      %p67 = scmp.eq.s32.totalorder %s27, 0
      %p68 = por %p66, %p67
      %s70 = sadd.s32 %s69, 1
      %p73 = scmp.eq.s32.totalorder %s21, 1
      %p74 = scmp.ne.s32.totalorder %s69, %s71
      %p75 = scmp.eq.s32.totalorder %s21, 0
      %p76 = por %p74, %p75
      %p77 = scmp.ne.s32.totalorder %s69, %s71
      %p78 = scmp.eq.s32.totalorder %s26, 1
      %p79 = por %p77, %p78
      %p80 = scmp.ne.s32.totalorder %s71, %s72
      %p81 = scmp.eq.s32.totalorder %s26, 0
      %p82 = por %p80, %p81
      %p83 = scmp.ne.s32.totalorder %s71, %s72
      %p84 = scmp.eq.s32.totalorder %s27, 1
      %p85 = por %p83, %p84
      %p87 = scmp.ne.s32.totalorder %s72, %s86
      %p88 = scmp.eq.s32.totalorder %s27, 0
      %p89 = por %p87, %p88
      %s91 = sadd.s32 %s90, 1
      %p94 = scmp.eq.s32.totalorder %s21, 1
      %p95 = scmp.ne.s32.totalorder %s90, %s92
      %p96 = scmp.eq.s32.totalorder %s21, 0
      %p97 = por %p95, %p96
      %p98 = scmp.ne.s32.totalorder %s90, %s92
      %p99 = scmp.eq.s32.totalorder %s26, 1
      %p100 = por %p98, %p99
      %p101 = scmp.ne.s32.totalorder %s92, %s93
      %p102 = scmp.eq.s32.totalorder %s26, 0
      %p103 = por %p101, %p102
      %p104 = scmp.ne.s32.totalorder %s92, %s93
      %p105 = scmp.eq.s32.totalorder %s27, 1
      %p106 = por %p104, %p105
      %p108 = scmp.ne.s32.totalorder %s93, %s107
      %p109 = scmp.eq.s32.totalorder %s27, 0
      %p110 = por %p108, %p109
      %s112 = sadd.s32 %s111, 1
      %p115 = scmp.eq.s32.totalorder %s21, 1
      %p116 = scmp.ne.s32.totalorder %s111, %s113
      %p117 = scmp.eq.s32.totalorder %s21, 0
      %p118 = por %p116, %p117
      %p119 = scmp.ne.s32.totalorder %s111, %s113
      %p120 = scmp.eq.s32.totalorder %s26, 1
      %p121 = por %p119, %p120
      %p122 = scmp.ne.s32.totalorder %s113, %s114
      %p123 = scmp.eq.s32.totalorder %s26, 0
      %p124 = por %p122, %p123
      %p125 = scmp.ne.s32.totalorder %s113, %s114
      %p126 = scmp.eq.s32.totalorder %s27, 1
      %p127 = por %p125, %p126
      %p129 = scmp.ne.s32.totalorder %s114, %s128
      %p130 = scmp.eq.s32.totalorder %s27, 0
      %p131 = por %p129, %p130
      %s133 = sadd.s32 %s132, 1
      %p136 = scmp.eq.s32.totalorder %s21, 1
      %p137 = scmp.ne.s32.totalorder %s132, %s134
      %p138 = scmp.eq.s32.totalorder %s21, 0
      %p139 = por %p137, %p138
      %p140 = scmp.ne.s32.totalorder %s132, %s134
      %p141 = scmp.eq.s32.totalorder %s26, 1
      %p142 = por %p140, %p141
      %p143 = scmp.ne.s32.totalorder %s134, %s135
      %p144 = scmp.eq.s32.totalorder %s26, 0
      %p145 = por %p143, %p144
      %p146 = scmp.ne.s32.totalorder %s134, %s135
      %p147 = scmp.eq.s32.totalorder %s27, 1
      %p148 = por %p146, %p147
      %p150 = scmp.ne.s32.totalorder %s135, %s149
      %p151 = scmp.eq.s32.totalorder %s27, 0
      %p152 = por %p150, %p151
      %s154 = sadd.s32 %s153, 1
      %p157 = scmp.eq.s32.totalorder %s21, 1
      %p158 = scmp.ne.s32.totalorder %s153, %s155
      %p159 = scmp.eq.s32.totalorder %s21, 0
      %p160 = por %p158, %p159
      %p161 = scmp.ne.s32.totalorder %s153, %s155
      %p162 = scmp.eq.s32.totalorder %s26, 1
      %p163 = por %p161, %p162
      %p164 = scmp.ne.s32.totalorder %s155, %s156
      %p165 = scmp.eq.s32.totalorder %s26, 0
      %p166 = por %p164, %p165
      %p167 = scmp.ne.s32.totalorder %s155, %s156
      %p168 = scmp.eq.s32.totalorder %s27, 1
      %p169 = por %p167, %p168
      %p171 = scmp.ne.s32.totalorder %s156, %s170
      %p172 = scmp.eq.s32.totalorder %s27, 0
      %p173 = por %p171, %p172
      %s174 = ssub.s32 %s28, %s40
      %s175 = ssub.s32 %s29, %s36
      %s176 = sor.u32 %s174, %s175
      %p177 = scmp.eq.s32.totalorder %s176, 0
      %s179 = sadd.s32 %s178, 1
      %s180 = scalar_select %p177, %s178, %s179
      %p183 = pneg %p177
      %p184 = scmp.eq.s32.totalorder %s21, 1
      %p185 = por %p183, %p184
      %p186 = scmp.ne.s32.totalorder %s178, %s181
      %p187 = scmp.eq.s32.totalorder %s21, 0
      %p188 = por %p186, %p187
      %p189 = scmp.ne.s32.totalorder %s178, %s181
      %p190 = scmp.eq.s32.totalorder %s26, 1
      %p191 = por %p189, %p190
      %p192 = scmp.ne.s32.totalorder %s181, %s182
      %p193 = scmp.eq.s32.totalorder %s26, 0
      %p194 = por %p192, %p193
      %p195 = scmp.ne.s32.totalorder %s181, %s182
      %p196 = scmp.eq.s32.totalorder %s27, 1
      %p197 = por %p195, %p196
      %p199 = scmp.ne.s32.totalorder %s182, %s198
      %p200 = scmp.eq.s32.totalorder %s27, 0
      %p201 = por %p199, %p200
      %s202 = ssub.s32 %s28, %s40
      %s203 = ssub.s32 %s29, %s36
      %s204 = sor.u32 %s202, %s203
      %p205 = scmp.eq.s32.totalorder %s204, 0
      %s207 = sadd.s32 %s206, 1
      %s208 = scalar_select %p205, %s206, %s207
      %p211 = pneg %p205
      %p212 = scmp.eq.s32.totalorder %s21, 1
      %p213 = por %p211, %p212
      %p214 = scmp.ne.s32.totalorder %s206, %s209
      %p215 = scmp.eq.s32.totalorder %s21, 0
      %p216 = por %p214, %p215
      %p217 = scmp.ne.s32.totalorder %s206, %s209
      %p218 = scmp.eq.s32.totalorder %s26, 1
      %p219 = por %p217, %p218
      %p220 = scmp.ne.s32.totalorder %s209, %s210
      %p221 = scmp.eq.s32.totalorder %s26, 0
      %p222 = por %p220, %p221
      %p223 = scmp.ne.s32.totalorder %s209, %s210
      %p224 = scmp.eq.s32.totalorder %s27, 1
      %p225 = por %p223, %p224
      %p227 = scmp.ne.s32.totalorder %s210, %s226
      %p228 = scmp.eq.s32.totalorder %s27, 0
      %p229 = por %p227, %p228
      %s230 = ssub.s32 %s28, %s40
      %s231 = ssub.s32 %s29, %s36
      %s232 = sor.u32 %s230, %s231
      %p233 = scmp.eq.s32.totalorder %s232, 0
      %s235 = sadd.s32 %s234, 1
      %s236 = scalar_select %p233, %s234, %s235
      %p239 = pneg %p233
      %p240 = scmp.eq.s32.totalorder %s21, 1
      %p241 = por %p239, %p240
      %p242 = scmp.ne.s32.totalorder %s234, %s237
      %p243 = scmp.eq.s32.totalorder %s21, 0
      %p244 = por %p242, %p243
      %p245 = scmp.ne.s32.totalorder %s234, %s237
      %p246 = scmp.eq.s32.totalorder %s26, 1
      %p247 = por %p245, %p246
      %p248 = scmp.ne.s32.totalorder %s237, %s238
      %p249 = scmp.eq.s32.totalorder %s26, 0
      %p250 = por %p248, %p249
      %p251 = scmp.ne.s32.totalorder %s237, %s238
      %p252 = scmp.eq.s32.totalorder %s27, 1
      %p253 = por %p251, %p252
      %p255 = scmp.ne.s32.totalorder %s238, %s254
      %p256 = scmp.eq.s32.totalorder %s27, 0
      %p257 = por %p255, %p256
      %p258 = scmp.le.s32.totalorder 1, %s21
      %p259 = scmp.lt.s32.totalorder %s21, 3
      %p260 = pnand %p258, %p259
      %p261 = pneg %p260
      // Predicated region
      $region9: #{tpu_custom_call.1} parent=5 // pred_check
        _
      $region10: #{tpu_custom_call.1} parent=5 // pred_check_branch
        %263 = sbr.rel (%p260) target = $region12
      $region11: #{tpu_custom_call.1} parent=5 // pred_region
        %s264 = ssub.s32 %s21, 1
        // Predicated region
        $region13: #{tpu_custom_call.1} parent=11 // pred_check
          %p265 = pneg %p82
        $region14: #{tpu_custom_call.1} parent=11 // pred_check_branch
          %267 = sbr.rel (%p265) target = $region16
        $region15: #{tpu_custom_call.1} parent=11 // pred_region
          _
        $region16: #{tpu_custom_call.1} parent=11 // pred_fallthru
          _
        // Predicated region
        $region17: #{tpu_custom_call.1} parent=11 // pred_check
          %p268 = pneg %p103
        $region18: #{tpu_custom_call.1} parent=11 // pred_check_branch
          %270 = sbr.rel (%p268) target = $region20
        $region19: #{tpu_custom_call.1} parent=11 // pred_region
          _
        $region20: #{tpu_custom_call.1} parent=11 // pred_fallthru
          _
        // Predicated region
        $region21: #{tpu_custom_call.1} parent=11 // pred_check
          %p271 = pneg %p124
        $region22: #{tpu_custom_call.1} parent=11 // pred_check_branch
          %273 = sbr.rel (%p271) target = $region24
        $region23: #{tpu_custom_call.1} parent=11 // pred_region
          _
        $region24: #{tpu_custom_call.1} parent=11 // pred_fallthru
          _
        // Predicated region
        $region25: #{tpu_custom_call.1} parent=11 // pred_check
          %p274 = pneg %p145
        $region26: #{tpu_custom_call.1} parent=11 // pred_check_branch
          %276 = sbr.rel (%p274) target = $region28
        $region27: #{tpu_custom_call.1} parent=11 // pred_region
          _
        $region28: #{tpu_custom_call.1} parent=11 // pred_fallthru
          _
        // Predicated region
        $region29: #{tpu_custom_call.1} parent=11 // pred_check
          %p277 = pneg %p166
        $region30: #{tpu_custom_call.1} parent=11 // pred_check_branch
          %279 = sbr.rel (%p277) target = $region32
        $region31: #{tpu_custom_call.1} parent=11 // pred_region
          _
        $region32: #{tpu_custom_call.1} parent=11 // pred_fallthru
          _
      $region12: #{tpu_custom_call.1} parent=5 // pred_fallthru
        _
      %p280 = scmp.lt.s32.totalorder %s21, 2
      // Predicated region
      $region33: #{tpu_custom_call.1} parent=5 // pred_check
        %p281 = pneg %p280
      $region34: #{tpu_custom_call.1} parent=5 // pred_check_branch
        %283 = sbr.rel (%p281) target = $region36
      $region35: #{tpu_custom_call.1} parent=5 // pred_region
        // Predicated region
        $region37: #{tpu_custom_call.1} parent=35 // pred_check
          %p284 = pneg %p55
        $region38: #{tpu_custom_call.1} parent=35 // pred_check_branch
          %286 = sbr.rel (%p284) target = $region40
        $region39: #{tpu_custom_call.1} parent=35 // pred_region
          %p287 = scmp.lt.s32.totalorder %s28, 1
          %s288 = scalar_select %p287, %s28, 1
          %p289 = scmp.lt.s32.totalorder %s29, 0
          %s290 = scalar_select %p289, %s29, 0
          %s291 = sadd.s32 %s290, %s288
          %s292 = smul.addr %s291, 4
          %s293 = scalar_lea.vmem %s0, %s292
        $region40: #{tpu_custom_call.1} parent=35 // pred_fallthru
          _
      $region36: #{tpu_custom_call.1} parent=5 // pred_fallthru
        _
      %p294 = scmp.le.s32.totalorder 1, %s21
      %p295 = scmp.lt.s32.totalorder %s21, 3
      %p296 = pnand %p294, %p295
      %p297 = pneg %p296
      // Predicated region
      $region41: #{tpu_custom_call.1} parent=5 // pred_check
        _
      $region42: #{tpu_custom_call.1} parent=5 // pred_check_branch
        %299 = sbr.rel (%p296) target = $region44
      $region43: #{tpu_custom_call.1} parent=5 // pred_region
        %s300 = ssub.s32 %s21, 1
        %p301 = scmp.lt.s32.totalorder %s30, 1
        %s302 = scalar_select %p301, %s30, 1
        %p303 = scmp.lt.s32.totalorder %s31, 0
        %s304 = scalar_select %p303, %s31, 0
        %s305 = sadd.s32 %s304, %s302
        %s306 = smul.addr %s305, 4
        %s307 = scalar_lea.vmem %s0, %s306
        %p308 = pneg %p61
        %p309 = pneg %p58
        %p310 = pneg %p82
        %p311 = pneg %p79
        %p312 = pneg %p103
        %p313 = pneg %p100
        %p314 = pneg %p124
        %p315 = pneg %p121
        %p316 = pneg %p145
        %p317 = pneg %p142
        %p318 = pneg %p166
        %p319 = pneg %p163
        %p320 = pneg %p194
        %p321 = pneg %p191
        %s322 = sand.u32 %s181, 1
        %s323 = scalar_lea.sflag [#allocation3], %s322
        %s324 = sand.u32 %s181, 1
        %s325 = smul.addr %s324, 16
        %s326 = scalar_lea.vmem [#allocation2], %s325
        %p327 = pneg %p222
        %p328 = pneg %p219
        %s329 = sand.u32 %s26, 1
        %s330 = scalar_lea.sflag [#allocation5], %s329
        %s331 = sand.u32 %s209, 1
        %s332 = smul.addr %s331, 16
        %s333 = scalar_lea.vmem [#allocation4], %s332
        %p334 = pneg %p250
        %p335 = pneg %p247
        %s336 = sand.u32 %s26, 1
        %s337 = scalar_lea.sflag [#allocation5], %s336
        %s338 = sand.u32 %s237, 1
        %s339 = smul.addr %s338, 16
        %s340 = scalar_lea.vmem [#allocation6], %s339
        %p341 = scmp.lt.s32.totalorder %s30, 1
        %s342 = scalar_select %p341, %s30, 1
        %p343 = scmp.lt.s32.totalorder %s31, 0
        %s344 = scalar_select %p343, %s31, 0
        %s345 = sadd.s32 %s344, %s342
        %s346 = smul.addr %s345, 4
        %s347 = scalar_lea.vmem %s0, %s346
        %v349 = vld [vmem:[%s347] sm:$0xf]
        %v350 = vunpack.c.l.bf16 %v349
        %v351 = vld [vmem:[%s1] sm:$0x1]
        %v352 = vld [vmem:[%s2] sm:$0x1]
        %vm353 = vcmask 261120
        %v354 = vsel %vm353, %v350, 0.0
        %355 = vadd.xlane.f32.xlu0 %v354
        %v356 = vpop.xlane.xlu0 %355
        %v357 = vrcp.pop 32.0
        %v358 = vmul.f32 %v356, %v357
        %v359 = vsub.f32 %v350, %v358
        %v360 = vmul.f32 %v359, %v359
        %v361 = vsel %vm353, %v360, 0.0
        %362 = vadd.xlane.f32.xlu0 %v361
        %v363 = vpop.xlane.xlu0 %362
        %v364 = vmul.f32 %v363, %v357
        %v365 = vadd.f32 %v364, 1e-05
        %v366 = vrsqrt.pop %v365
        %v367 = vmul.f32 %v359, %v366
        %v369 = vlaneseq
        %v370 = vshrl.u32 %v369, 7
        %v371 = vsub.s32 0, %v370
        %v372 = vrot.slane %v351, %v371
        %v374 = vmul.f32 %v367, %v372
        %v376 = vlaneseq
        %v377 = vshrl.u32 %v376, 7
        %v378 = vsub.s32 0, %v377
        %v379 = vrot.slane %v352, %v378
        %v381 = vadd.f32 %v374, %v379
        %v382 = vpack.c.bf16 %v381, %v381
        %v383 = vld [vmem:[%s3] sm:$0xf]
        %v384 = vld [vmem:[%s3 + $0x4] sm:$0xf]
        %v385 = vld [vmem:[%s3 + $0x8] sm:$0xf]
        %v386 = vld [vmem:[%s3 + $0xc] sm:$0xf]
        %v391 = vunpack.c.l.b16 %v383
        %v392 = vunpack.c.l.b16 %v384
        %v393 = vunpack.c.l.b16 %v385
        %v394 = vunpack.c.l.b16 %v386
        %v395 = vpack.c.b16 %v392, %v391
        %v396 = vpack.c.b16 %v394, %v393
        %v400 = vsel %vm353, %v382, 0
        %402 = vmatprep.subr.bf16.mxu0 0
        %403 = vmatpush1.bf16.msra.mxu0 %v395
        %404 = vmatprep.subr.bf16.mxu0 0
        %405 = vmatpush1.bf16.msra.mxu0 %v396
        %406 = vmatprep.subr.bf16.mxu0 0
        %407 = vmatpush1.bf16.msra.mxu0 0
        %408 = vmatprep.subr.bf16.mxu0 0
        %409 = vmatpush1.bf16.msra.mxu0 0
        %410 = vmatprep.subr.bf16.mxu0 0
        %411 = vmatpush1.bf16.msra.mxu0 0
        %412 = vmatprep.subr.bf16.mxu0 0
        %413 = vmatpush1.bf16.msra.mxu0 0
        %414 = vmatprep.subr.bf16.mxu0 0
        %415 = vmatpush1.bf16.msra.mxu0 0
        %416 = vmatprep.subr.bf16.mxu0 0
        %417 = vmatpush1.bf16.msra.mxu0 0
        %418 = vmatprep.subr.bf16.mxu0 0
        %419 = vmatpush1.bf16.msra.mxu0 0
        %420 = vmatprep.subr.bf16.mxu0 0
        %421 = vmatpush1.bf16.msra.mxu0 0
        %422 = vmatprep.subr.bf16.mxu0 0
        %423 = vmatpush1.bf16.msra.mxu0 0
        %424 = vmatprep.subr.bf16.mxu0 0
        %425 = vmatpush1.bf16.msra.mxu0 0
        %426 = vmatprep.subr.bf16.mxu0 0
        %427 = vmatpush1.bf16.msra.mxu0 0
        %428 = vmatprep.subr.bf16.mxu0 0
        %429 = vmatpush1.bf16.msra.mxu0 0
        %430 = vmatprep.subr.bf16.mxu0 0
        %431 = vmatpush1.bf16.msra.mxu0 0
        %432 = vmatprep.subr.bf16.mxu0 0
        %433 = vmatpush1.bf16.msra.mxu0 0
        %434 = vmatprep.mubr.bf16.mxu0 0
        %435 = vmatmul.mubr.bf16.gmra.mrb[0].mxu0 %v400
        %v436 = vpop.f32.mrb[0].mxu0
        %v437 = vadd.f32 0.0, %v436
        %v438 = vpop.f32.mrb[0].mxu0
        %v439 = vpop.f32.mrb[0].mxu0
        %v440 = vpop.f32.mrb[0].mxu0
        %441 = vdwg.mxu0
        %v442 = vpack.c.bf16 %v437, %v437
        %vm443 = vcmask 60416
        %444 = vst.msk [vmem:[%s326] sm:$0xf] %vm443, %v442
        %v445 = vld [vmem:[%s4] sm:$0xf]
        %v446 = vld [vmem:[%s4 + $0x4] sm:$0xf]
        %v447 = vld [vmem:[%s4 + $0x8] sm:$0xf]
        %v448 = vld [vmem:[%s4 + $0xc] sm:$0xf]
        %v453 = vunpack.c.l.b16 %v445
        %v454 = vunpack.c.l.b16 %v446
        %v455 = vunpack.c.l.b16 %v447
        %v456 = vunpack.c.l.b16 %v448
        %v457 = vpack.c.b16 %v454, %v453
        %v458 = vpack.c.b16 %v456, %v455
        %461 = vmatprep.subr.bf16.mxu0 0
        %462 = vmatpush1.bf16.msra.mxu0 %v457
        %463 = vmatprep.subr.bf16.mxu0 0
        %464 = vmatpush1.bf16.msra.mxu0 %v458
        %465 = vmatprep.subr.bf16.mxu0 0
        %466 = vmatpush1.bf16.msra.mxu0 0
        %467 = vmatprep.subr.bf16.mxu0 0
        %468 = vmatpush1.bf16.msra.mxu0 0
        %469 = vmatprep.subr.bf16.mxu0 0
        %470 = vmatpush1.bf16.msra.mxu0 0
        %471 = vmatprep.subr.bf16.mxu0 0
        %472 = vmatpush1.bf16.msra.mxu0 0
        %473 = vmatprep.subr.bf16.mxu0 0
        %474 = vmatpush1.bf16.msra.mxu0 0
        %475 = vmatprep.subr.bf16.mxu0 0
        %476 = vmatpush1.bf16.msra.mxu0 0
        %477 = vmatprep.subr.bf16.mxu0 0
        %478 = vmatpush1.bf16.msra.mxu0 0
        %479 = vmatprep.subr.bf16.mxu0 0
        %480 = vmatpush1.bf16.msra.mxu0 0
        %481 = vmatprep.subr.bf16.mxu0 0
        %482 = vmatpush1.bf16.msra.mxu0 0
        %483 = vmatprep.subr.bf16.mxu0 0
        %484 = vmatpush1.bf16.msra.mxu0 0
        %485 = vmatprep.subr.bf16.mxu0 0
        %486 = vmatpush1.bf16.msra.mxu0 0
        %487 = vmatprep.subr.bf16.mxu0 0
        %488 = vmatpush1.bf16.msra.mxu0 0
        %489 = vmatprep.subr.bf16.mxu0 0
        %490 = vmatpush1.bf16.msra.mxu0 0
        %491 = vmatprep.subr.bf16.mxu0 0
        %492 = vmatpush1.bf16.msra.mxu0 0
        %493 = vmatprep.mubr.bf16.mxu0 0
        %494 = vmatmul.mubr.bf16.gmra.mrb[0].mxu0 %v400
        %v495 = vpop.f32.mrb[0].mxu0
        %v496 = vadd.f32 0.0, %v495
        %v497 = vpop.f32.mrb[0].mxu0
        %v498 = vpop.f32.mrb[0].mxu0
        %v499 = vpop.f32.mrb[0].mxu0
        %500 = vdwg.mxu0
        %v501 = vpack.c.bf16 %v496, %v496
        %502 = vst.msk [vmem:[%s333] sm:$0xf] %vm443, %v501
        %v503 = vld [vmem:[%s5] sm:$0xf]
        %v504 = vld [vmem:[%s5 + $0x4] sm:$0xf]
        %v505 = vld [vmem:[%s5 + $0x8] sm:$0xf]
        %v506 = vld [vmem:[%s5 + $0xc] sm:$0xf]
        %v511 = vunpack.c.l.b16 %v503
        %v512 = vunpack.c.l.b16 %v504
        %v513 = vunpack.c.l.b16 %v505
        %v514 = vunpack.c.l.b16 %v506
        %v515 = vpack.c.b16 %v512, %v511
        %v516 = vpack.c.b16 %v514, %v513
        %519 = vmatprep.subr.bf16.mxu0 0
        %520 = vmatpush1.bf16.msra.mxu0 %v515
        %521 = vmatprep.subr.bf16.mxu0 0
        %522 = vmatpush1.bf16.msra.mxu0 %v516
        %523 = vmatprep.subr.bf16.mxu0 0
        %524 = vmatpush1.bf16.msra.mxu0 0
        %525 = vmatprep.subr.bf16.mxu0 0
        %526 = vmatpush1.bf16.msra.mxu0 0
        %527 = vmatprep.subr.bf16.mxu0 0
        %528 = vmatpush1.bf16.msra.mxu0 0
        %529 = vmatprep.subr.bf16.mxu0 0
        %530 = vmatpush1.bf16.msra.mxu0 0
        %531 = vmatprep.subr.bf16.mxu0 0
        %532 = vmatpush1.bf16.msra.mxu0 0
        %533 = vmatprep.subr.bf16.mxu0 0
        %534 = vmatpush1.bf16.msra.mxu0 0
        %535 = vmatprep.subr.bf16.mxu0 0
        %536 = vmatpush1.bf16.msra.mxu0 0
        %537 = vmatprep.subr.bf16.mxu0 0
        %538 = vmatpush1.bf16.msra.mxu0 0
        %539 = vmatprep.subr.bf16.mxu0 0
        %540 = vmatpush1.bf16.msra.mxu0 0
        %541 = vmatprep.subr.bf16.mxu0 0
        %542 = vmatpush1.bf16.msra.mxu0 0
        %543 = vmatprep.subr.bf16.mxu0 0
        %544 = vmatpush1.bf16.msra.mxu0 0
        %545 = vmatprep.subr.bf16.mxu0 0
        %546 = vmatpush1.bf16.msra.mxu0 0
        %547 = vmatprep.subr.bf16.mxu0 0
        %548 = vmatpush1.bf16.msra.mxu0 0
        %549 = vmatprep.subr.bf16.mxu0 0
        %550 = vmatpush1.bf16.msra.mxu0 0
        %551 = vmatprep.mubr.bf16.mxu0 0
        %552 = vmatmul.mubr.bf16.gmra.mrb[0].mxu0 %v400
        %v553 = vpop.f32.mrb[0].mxu0
        %v554 = vadd.f32 0.0, %v553
        %v555 = vpop.f32.mrb[0].mxu0
        %v556 = vpop.f32.mrb[0].mxu0
        %v557 = vpop.f32.mrb[0].mxu0
        %558 = vdwg.mxu0
        %v559 = vpack.c.bf16 %v554, %v554
        %560 = vst.msk [vmem:[%s340] sm:$0xf] %vm443, %v559
        %s561 = scalar_lea.vmem %s3, 16
        %v562 = vld [vmem:[%s561] sm:$0xf]
        %v563 = vld [vmem:[%s561 + $0x4] sm:$0xf]
        %v564 = vld [vmem:[%s561 + $0x8] sm:$0xf]
        %v565 = vld [vmem:[%s561 + $0xc] sm:$0xf]
        %v570 = vunpack.c.l.b16 %v562
        %v571 = vunpack.c.l.b16 %v563
        %v572 = vunpack.c.l.b16 %v564
        %v573 = vunpack.c.l.b16 %v565
        %v574 = vpack.c.b16 %v571, %v570
        %v575 = vpack.c.b16 %v573, %v572
        %578 = vmatprep.subr.bf16.mxu0 0
        %579 = vmatpush1.bf16.msra.mxu0 %v574
        %580 = vmatprep.subr.bf16.mxu0 0
        %581 = vmatpush1.bf16.msra.mxu0 %v575
        %582 = vmatprep.subr.bf16.mxu0 0
        %583 = vmatpush1.bf16.msra.mxu0 0
        %584 = vmatprep.subr.bf16.mxu0 0
        %585 = vmatpush1.bf16.msra.mxu0 0
        %586 = vmatprep.subr.bf16.mxu0 0
        %587 = vmatpush1.bf16.msra.mxu0 0
        %588 = vmatprep.subr.bf16.mxu0 0
        %589 = vmatpush1.bf16.msra.mxu0 0
        %590 = vmatprep.subr.bf16.mxu0 0
        %591 = vmatpush1.bf16.msra.mxu0 0
        %592 = vmatprep.subr.bf16.mxu0 0
        %593 = vmatpush1.bf16.msra.mxu0 0
        %594 = vmatprep.subr.bf16.mxu0 0
        %595 = vmatpush1.bf16.msra.mxu0 0
        %596 = vmatprep.subr.bf16.mxu0 0
        %597 = vmatpush1.bf16.msra.mxu0 0
        %598 = vmatprep.subr.bf16.mxu0 0
        %599 = vmatpush1.bf16.msra.mxu0 0
        %600 = vmatprep.subr.bf16.mxu0 0
        %601 = vmatpush1.bf16.msra.mxu0 0
        %602 = vmatprep.subr.bf16.mxu0 0
        %603 = vmatpush1.bf16.msra.mxu0 0
        %604 = vmatprep.subr.bf16.mxu0 0
        %605 = vmatpush1.bf16.msra.mxu0 0
        %606 = vmatprep.subr.bf16.mxu0 0
        %607 = vmatpush1.bf16.msra.mxu0 0
        %608 = vmatprep.subr.bf16.mxu0 0
        %609 = vmatpush1.bf16.msra.mxu0 0
        %610 = vmatprep.mubr.bf16.mxu0 0
        %611 = vmatmul.mubr.bf16.gmra.mrb[0].mxu0 %v400
        %v612 = vpop.f32.mrb[0].mxu0
        %v613 = vadd.f32 0.0, %v612
        %v614 = vpop.f32.mrb[0].mxu0
        %v615 = vpop.f32.mrb[0].mxu0
        %v616 = vpop.f32.mrb[0].mxu0
        %617 = vdwg.mxu0
        %v618 = vpack.c.bf16 %v613, %v613
        %s619 = scalar_lea.vmem %s326, 4 [#allocation2]
        %620 = vst.msk [vmem:[%s619] sm:$0xf] %vm443, %v618
        %s621 = scalar_lea.vmem %s4, 16
        %v622 = vld [vmem:[%s621] sm:$0xf]
        %v623 = vld [vmem:[%s621 + $0x4] sm:$0xf]
        %v624 = vld [vmem:[%s621 + $0x8] sm:$0xf]
        %v625 = vld [vmem:[%s621 + $0xc] sm:$0xf]
        %v630 = vunpack.c.l.b16 %v622
        %v631 = vunpack.c.l.b16 %v623
        %v632 = vunpack.c.l.b16 %v624
        %v633 = vunpack.c.l.b16 %v625
        %v634 = vpack.c.b16 %v631, %v630
        %v635 = vpack.c.b16 %v633, %v632
        %638 = vmatprep.subr.bf16.mxu0 0
        %639 = vmatpush1.bf16.msra.mxu0 %v634
        %640 = vmatprep.subr.bf16.mxu0 0
        %641 = vmatpush1.bf16.msra.mxu0 %v635
        %642 = vmatprep.subr.bf16.mxu0 0
        %643 = vmatpush1.bf16.msra.mxu0 0
        %644 = vmatprep.subr.bf16.mxu0 0
        %645 = vmatpush1.bf16.msra.mxu0 0
        %646 = vmatprep.subr.bf16.mxu0 0
        %647 = vmatpush1.bf16.msra.mxu0 0
        %648 = vmatprep.subr.bf16.mxu0 0
        %649 = vmatpush1.bf16.msra.mxu0 0
        %650 = vmatprep.subr.bf16.mxu0 0
        %651 = vmatpush1.bf16.msra.mxu0 0
        %652 = vmatprep.subr.bf16.mxu0 0
        %653 = vmatpush1.bf16.msra.mxu0 0
        %654 = vmatprep.subr.bf16.mxu0 0
        %655 = vmatpush1.bf16.msra.mxu0 0
        %656 = vmatprep.subr.bf16.mxu0 0
        %657 = vmatpush1.bf16.msra.mxu0 0
        %658 = vmatprep.subr.bf16.mxu0 0
        %659 = vmatpush1.bf16.msra.mxu0 0
        %660 = vmatprep.subr.bf16.mxu0 0
        %661 = vmatpush1.bf16.msra.mxu0 0
        %662 = vmatprep.subr.bf16.mxu0 0
        %663 = vmatpush1.bf16.msra.mxu0 0
        %664 = vmatprep.subr.bf16.mxu0 0
        %665 = vmatpush1.bf16.msra.mxu0 0
        %666 = vmatprep.subr.bf16.mxu0 0
        %667 = vmatpush1.bf16.msra.mxu0 0
        %668 = vmatprep.subr.bf16.mxu0 0
        %669 = vmatpush1.bf16.msra.mxu0 0
        %670 = vmatprep.mubr.bf16.mxu0 0
        %671 = vmatmul.mubr.bf16.gmra.mrb[0].mxu0 %v400
        %v672 = vpop.f32.mrb[0].mxu0
        %v673 = vadd.f32 0.0, %v672
        %v674 = vpop.f32.mrb[0].mxu0
        %v675 = vpop.f32.mrb[0].mxu0
        %v676 = vpop.f32.mrb[0].mxu0
        %677 = vdwg.mxu0
        %v678 = vpack.c.bf16 %v673, %v673
        %s679 = scalar_lea.vmem %s333, 4 [#allocation4]
        %680 = vst.msk [vmem:[%s679] sm:$0xf] %vm443, %v678
        %s681 = scalar_lea.vmem %s5, 16
        %v682 = vld [vmem:[%s681] sm:$0xf]
        %v683 = vld [vmem:[%s681 + $0x4] sm:$0xf]
        %v684 = vld [vmem:[%s681 + $0x8] sm:$0xf]
        %v685 = vld [vmem:[%s681 + $0xc] sm:$0xf]
        %v690 = vunpack.c.l.b16 %v682
        %v691 = vunpack.c.l.b16 %v683
        %v692 = vunpack.c.l.b16 %v684
        %v693 = vunpack.c.l.b16 %v685
        %v694 = vpack.c.b16 %v691, %v690
        %v695 = vpack.c.b16 %v693, %v692
        %698 = vmatprep.subr.bf16.mxu0 0
        %699 = vmatpush1.bf16.msra.mxu0 %v694
        %700 = vmatprep.subr.bf16.mxu0 0
        %701 = vmatpush1.bf16.msra.mxu0 %v695
        %702 = vmatprep.subr.bf16.mxu0 0
        %703 = vmatpush1.bf16.msra.mxu0 0
        %704 = vmatprep.subr.bf16.mxu0 0
        %705 = vmatpush1.bf16.msra.mxu0 0
        %706 = vmatprep.subr.bf16.mxu0 0
        %707 = vmatpush1.bf16.msra.mxu0 0
        %708 = vmatprep.subr.bf16.mxu0 0
        %709 = vmatpush1.bf16.msra.mxu0 0
        %710 = vmatprep.subr.bf16.mxu0 0
        %711 = vmatpush1.bf16.msra.mxu0 0
        %712 = vmatprep.subr.bf16.mxu0 0
        %713 = vmatpush1.bf16.msra.mxu0 0
        %714 = vmatprep.subr.bf16.mxu0 0
        %715 = vmatpush1.bf16.msra.mxu0 0
        %716 = vmatprep.subr.bf16.mxu0 0
        %717 = vmatpush1.bf16.msra.mxu0 0
        %718 = vmatprep.subr.bf16.mxu0 0
        %719 = vmatpush1.bf16.msra.mxu0 0
        %720 = vmatprep.subr.bf16.mxu0 0
        %721 = vmatpush1.bf16.msra.mxu0 0
        %722 = vmatprep.subr.bf16.mxu0 0
        %723 = vmatpush1.bf16.msra.mxu0 0
        %724 = vmatprep.subr.bf16.mxu0 0
        %725 = vmatpush1.bf16.msra.mxu0 0
        %726 = vmatprep.subr.bf16.mxu0 0
        %727 = vmatpush1.bf16.msra.mxu0 0
        %728 = vmatprep.subr.bf16.mxu0 0
        %729 = vmatpush1.bf16.msra.mxu0 0
        %730 = vmatprep.mubr.bf16.mxu0 0
        %731 = vmatmul.mubr.bf16.gmra.mrb[0].mxu0 %v400
        %v732 = vpop.f32.mrb[0].mxu0
        %v733 = vadd.f32 0.0, %v732
        %v734 = vpop.f32.mrb[0].mxu0
        %v735 = vpop.f32.mrb[0].mxu0
        %v736 = vpop.f32.mrb[0].mxu0
        %737 = vdwg.mxu0
        %v738 = vpack.c.bf16 %v733, %v733
        %s739 = scalar_lea.vmem %s340, 4 [#allocation6]
        %740 = vst.msk [vmem:[%s739] sm:$0xf] %vm443, %v738
        %s741 = scalar_lea.vmem %s3, 32
        %v742 = vld [vmem:[%s741] sm:$0xf]
        %v743 = vld [vmem:[%s741 + $0x4] sm:$0xf]
        %v744 = vld [vmem:[%s741 + $0x8] sm:$0xf]
        %v745 = vld [vmem:[%s741 + $0xc] sm:$0xf]
        %v750 = vunpack.c.l.b16 %v742
        %v751 = vunpack.c.l.b16 %v743
        %v752 = vunpack.c.l.b16 %v744
        %v753 = vunpack.c.l.b16 %v745
        %v754 = vpack.c.b16 %v751, %v750
        %v755 = vpack.c.b16 %v753, %v752
        %758 = vmatprep.subr.bf16.mxu0 0
        %759 = vmatpush1.bf16.msra.mxu0 %v754
        %760 = vmatprep.subr.bf16.mxu0 0
        %761 = vmatpush1.bf16.msra.mxu0 %v755
        %762 = vmatprep.subr.bf16.mxu0 0
        %763 = vmatpush1.bf16.msra.mxu0 0
        %764 = vmatprep.subr.bf16.mxu0 0
        %765 = vmatpush1.bf16.msra.mxu0 0
        %766 = vmatprep.subr.bf16.mxu0 0
        %767 = vmatpush1.bf16.msra.mxu0 0
        %768 = vmatprep.subr.bf16.mxu0 0
        %769 = vmatpush1.bf16.msra.mxu0 0
        %770 = vmatprep.subr.bf16.mxu0 0
        %771 = vmatpush1.bf16.msra.mxu0 0
        %772 = vmatprep.subr.bf16.mxu0 0
        %773 = vmatpush1.bf16.msra.mxu0 0
        %774 = vmatprep.subr.bf16.mxu0 0
        %775 = vmatpush1.bf16.msra.mxu0 0
        %776 = vmatprep.subr.bf16.mxu0 0
        %777 = vmatpush1.bf16.msra.mxu0 0
        %778 = vmatprep.subr.bf16.mxu0 0
        %779 = vmatpush1.bf16.msra.mxu0 0
        %780 = vmatprep.subr.bf16.mxu0 0
        %781 = vmatpush1.bf16.msra.mxu0 0
        %782 = vmatprep.subr.bf16.mxu0 0
        %783 = vmatpush1.bf16.msra.mxu0 0
        %784 = vmatprep.subr.bf16.mxu0 0
        %785 = vmatpush1.bf16.msra.mxu0 0
        %786 = vmatprep.subr.bf16.mxu0 0
        %787 = vmatpush1.bf16.msra.mxu0 0
        %788 = vmatprep.subr.bf16.mxu0 0
        %789 = vmatpush1.bf16.msra.mxu0 0
        %790 = vmatprep.mubr.bf16.mxu0 0
        %791 = vmatmul.mubr.bf16.gmra.mrb[0].mxu0 %v400
        %v792 = vpop.f32.mrb[0].mxu0
        %v793 = vadd.f32 0.0, %v792
        %v794 = vpop.f32.mrb[0].mxu0
        %v795 = vpop.f32.mrb[0].mxu0
        %v796 = vpop.f32.mrb[0].mxu0
        %797 = vdwg.mxu0
        %v798 = vpack.c.bf16 %v793, %v793
        %s799 = scalar_lea.vmem %s326, 8 [#allocation2]
        %800 = vst.msk [vmem:[%s799] sm:$0xf] %vm443, %v798
        %s801 = scalar_lea.vmem %s4, 32
        %v802 = vld [vmem:[%s801] sm:$0xf]
        %v803 = vld [vmem:[%s801 + $0x4] sm:$0xf]
        %v804 = vld [vmem:[%s801 + $0x8] sm:$0xf]
        %v805 = vld [vmem:[%s801 + $0xc] sm:$0xf]
        %v810 = vunpack.c.l.b16 %v802
        %v811 = vunpack.c.l.b16 %v803
        %v812 = vunpack.c.l.b16 %v804
        %v813 = vunpack.c.l.b16 %v805
        %v814 = vpack.c.b16 %v811, %v810
        %v815 = vpack.c.b16 %v813, %v812
        %818 = vmatprep.subr.bf16.mxu0 0
        %819 = vmatpush1.bf16.msra.mxu0 %v814
        %820 = vmatprep.subr.bf16.mxu0 0
        %821 = vmatpush1.bf16.msra.mxu0 %v815
        %822 = vmatprep.subr.bf16.mxu0 0
        %823 = vmatpush1.bf16.msra.mxu0 0
        %824 = vmatprep.subr.bf16.mxu0 0
        %825 = vmatpush1.bf16.msra.mxu0 0
        %826 = vmatprep.subr.bf16.mxu0 0
        %827 = vmatpush1.bf16.msra.mxu0 0
        %828 = vmatprep.subr.bf16.mxu0 0
        %829 = vmatpush1.bf16.msra.mxu0 0
        %830 = vmatprep.subr.bf16.mxu0 0
        %831 = vmatpush1.bf16.msra.mxu0 0
        %832 = vmatprep.subr.bf16.mxu0 0
        %833 = vmatpush1.bf16.msra.mxu0 0
        %834 = vmatprep.subr.bf16.mxu0 0
        %835 = vmatpush1.bf16.msra.mxu0 0
        %836 = vmatprep.subr.bf16.mxu0 0
        %837 = vmatpush1.bf16.msra.mxu0 0
        %838 = vmatprep.subr.bf16.mxu0 0
        %839 = vmatpush1.bf16.msra.mxu0 0
        %840 = vmatprep.subr.bf16.mxu0 0
        %841 = vmatpush1.bf16.msra.mxu0 0
        %842 = vmatprep.subr.bf16.mxu0 0
        %843 = vmatpush1.bf16.msra.mxu0 0
        %844 = vmatprep.subr.bf16.mxu0 0
        %845 = vmatpush1.bf16.msra.mxu0 0
        %846 = vmatprep.subr.bf16.mxu0 0
        %847 = vmatpush1.bf16.msra.mxu0 0
        %848 = vmatprep.subr.bf16.mxu0 0
        %849 = vmatpush1.bf16.msra.mxu0 0
        %850 = vmatprep.mubr.bf16.mxu0 0
        %851 = vmatmul.mubr.bf16.gmra.mrb[0].mxu0 %v400
        %v852 = vpop.f32.mrb[0].mxu0
        %v853 = vadd.f32 0.0, %v852
        %v854 = vpop.f32.mrb[0].mxu0
        %v855 = vpop.f32.mrb[0].mxu0
        %v856 = vpop.f32.mrb[0].mxu0
        %857 = vdwg.mxu0
        %v858 = vpack.c.bf16 %v853, %v853
        %s859 = scalar_lea.vmem %s333, 8 [#allocation4]
        %860 = vst.msk [vmem:[%s859] sm:$0xf] %vm443, %v858
        %s861 = scalar_lea.vmem %s5, 32
        %v862 = vld [vmem:[%s861] sm:$0xf]
        %v863 = vld [vmem:[%s861 + $0x4] sm:$0xf]
        %v864 = vld [vmem:[%s861 + $0x8] sm:$0xf]
        %v865 = vld [vmem:[%s861 + $0xc] sm:$0xf]
        %v870 = vunpack.c.l.b16 %v862
        %v871 = vunpack.c.l.b16 %v863
        %v872 = vunpack.c.l.b16 %v864
        %v873 = vunpack.c.l.b16 %v865
        %v874 = vpack.c.b16 %v871, %v870
        %v875 = vpack.c.b16 %v873, %v872
        %878 = vmatprep.subr.bf16.mxu0 0
        %879 = vmatpush1.bf16.msra.mxu0 %v874
        %880 = vmatprep.subr.bf16.mxu0 0
        %881 = vmatpush1.bf16.msra.mxu0 %v875
        %882 = vmatprep.subr.bf16.mxu0 0
        %883 = vmatpush1.bf16.msra.mxu0 0
        %884 = vmatprep.subr.bf16.mxu0 0
        %885 = vmatpush1.bf16.msra.mxu0 0
        %886 = vmatprep.subr.bf16.mxu0 0
        %887 = vmatpush1.bf16.msra.mxu0 0
        %888 = vmatprep.subr.bf16.mxu0 0
        %889 = vmatpush1.bf16.msra.mxu0 0
        %890 = vmatprep.subr.bf16.mxu0 0
        %891 = vmatpush1.bf16.msra.mxu0 0
        %892 = vmatprep.subr.bf16.mxu0 0
        %893 = vmatpush1.bf16.msra.mxu0 0
        %894 = vmatprep.subr.bf16.mxu0 0
        %895 = vmatpush1.bf16.msra.mxu0 0
        %896 = vmatprep.subr.bf16.mxu0 0
        %897 = vmatpush1.bf16.msra.mxu0 0
        %898 = vmatprep.subr.bf16.mxu0 0
        %899 = vmatpush1.bf16.msra.mxu0 0
        %900 = vmatprep.subr.bf16.mxu0 0
        %901 = vmatpush1.bf16.msra.mxu0 0
        %902 = vmatprep.subr.bf16.mxu0 0
        %903 = vmatpush1.bf16.msra.mxu0 0
        %904 = vmatprep.subr.bf16.mxu0 0
        %905 = vmatpush1.bf16.msra.mxu0 0
        %906 = vmatprep.subr.bf16.mxu0 0
        %907 = vmatpush1.bf16.msra.mxu0 0
        %908 = vmatprep.subr.bf16.mxu0 0
        %909 = vmatpush1.bf16.msra.mxu0 0
        %910 = vmatprep.mubr.bf16.mxu0 0
        %911 = vmatmul.mubr.bf16.gmra.mrb[0].mxu0 %v400
        %v912 = vpop.f32.mrb[0].mxu0
        %v913 = vadd.f32 0.0, %v912
        %v914 = vpop.f32.mrb[0].mxu0
        %v915 = vpop.f32.mrb[0].mxu0
        %v916 = vpop.f32.mrb[0].mxu0
        %917 = vdwg.mxu0
        %v918 = vpack.c.bf16 %v913, %v913
        %s919 = scalar_lea.vmem %s340, 8 [#allocation6]
        %920 = vst.msk [vmem:[%s919] sm:$0xf] %vm443, %v918
        %s921 = scalar_lea.vmem %s3, 48
        %v922 = vld [vmem:[%s921] sm:$0xf]
        %v923 = vld [vmem:[%s921 + $0x4] sm:$0xf]
        %v924 = vld [vmem:[%s921 + $0x8] sm:$0xf]
        %v925 = vld [vmem:[%s921 + $0xc] sm:$0xf]
        %v930 = vunpack.c.l.b16 %v922
        %v931 = vunpack.c.l.b16 %v923
        %v932 = vunpack.c.l.b16 %v924
        %v933 = vunpack.c.l.b16 %v925
        %v934 = vpack.c.b16 %v931, %v930
        %v935 = vpack.c.b16 %v933, %v932
        %938 = vmatprep.subr.bf16.mxu0 0
        %939 = vmatpush1.bf16.msra.mxu0 %v934
        %940 = vmatprep.subr.bf16.mxu0 0
        %941 = vmatpush1.bf16.msra.mxu0 %v935
        %942 = vmatprep.subr.bf16.mxu0 0
        %943 = vmatpush1.bf16.msra.mxu0 0
        %944 = vmatprep.subr.bf16.mxu0 0
        %945 = vmatpush1.bf16.msra.mxu0 0
        %946 = vmatprep.subr.bf16.mxu0 0
        %947 = vmatpush1.bf16.msra.mxu0 0
        %948 = vmatprep.subr.bf16.mxu0 0
        %949 = vmatpush1.bf16.msra.mxu0 0
        %950 = vmatprep.subr.bf16.mxu0 0
        %951 = vmatpush1.bf16.msra.mxu0 0
        %952 = vmatprep.subr.bf16.mxu0 0
        %953 = vmatpush1.bf16.msra.mxu0 0
        %954 = vmatprep.subr.bf16.mxu0 0
        %955 = vmatpush1.bf16.msra.mxu0 0
        %956 = vmatprep.subr.bf16.mxu0 0
        %957 = vmatpush1.bf16.msra.mxu0 0
        %958 = vmatprep.subr.bf16.mxu0 0
        %959 = vmatpush1.bf16.msra.mxu0 0
        %960 = vmatprep.subr.bf16.mxu0 0
        %961 = vmatpush1.bf16.msra.mxu0 0
        %962 = vmatprep.subr.bf16.mxu0 0
        %963 = vmatpush1.bf16.msra.mxu0 0
        %964 = vmatprep.subr.bf16.mxu0 0
        %965 = vmatpush1.bf16.msra.mxu0 0
        %966 = vmatprep.subr.bf16.mxu0 0
        %967 = vmatpush1.bf16.msra.mxu0 0
        %968 = vmatprep.subr.bf16.mxu0 0
        %969 = vmatpush1.bf16.msra.mxu0 0
        %970 = vmatprep.mubr.bf16.mxu0 0
        %971 = vmatmul.mubr.bf16.gmra.mrb[0].mxu0 %v400
        %v972 = vpop.f32.mrb[0].mxu0
        %v973 = vadd.f32 0.0, %v972
        %v974 = vpop.f32.mrb[0].mxu0
        %v975 = vpop.f32.mrb[0].mxu0
        %v976 = vpop.f32.mrb[0].mxu0
        %977 = vdwg.mxu0
        %v978 = vpack.c.bf16 %v973, %v973
        %s979 = scalar_lea.vmem %s326, 12 [#allocation2]
        %980 = vst.msk [vmem:[%s979] sm:$0xf] %vm443, %v978
        %s981 = scalar_lea.vmem %s4, 48
        %v982 = vld [vmem:[%s981] sm:$0xf]
        %v983 = vld [vmem:[%s981 + $0x4] sm:$0xf]
        %v984 = vld [vmem:[%s981 + $0x8] sm:$0xf]
        %v985 = vld [vmem:[%s981 + $0xc] sm:$0xf]
        %v990 = vunpack.c.l.b16 %v982
        %v991 = vunpack.c.l.b16 %v983
        %v992 = vunpack.c.l.b16 %v984
        %v993 = vunpack.c.l.b16 %v985
        %v994 = vpack.c.b16 %v991, %v990
        %v995 = vpack.c.b16 %v993, %v992
        %998 = vmatprep.subr.bf16.mxu0 0
        %999 = vmatpush1.bf16.msra.mxu0 %v994
        %1000 = vmatprep.subr.bf16.mxu0 0
        %1001 = vmatpush1.bf16.msra.mxu0 %v995
        %1002 = vmatprep.subr.bf16.mxu0 0
        %1003 = vmatpush1.bf16.msra.mxu0 0
        %1004 = vmatprep.subr.bf16.mxu0 0
        %1005 = vmatpush1.bf16.msra.mxu0 0
        %1006 = vmatprep.subr.bf16.mxu0 0
        %1007 = vmatpush1.bf16.msra.mxu0 0
        %1008 = vmatprep.subr.bf16.mxu0 0
        %1009 = vmatpush1.bf16.msra.mxu0 0
        %1010 = vmatprep.subr.bf16.mxu0 0
        %1011 = vmatpush1.bf16.msra.mxu0 0
        %1012 = vmatprep.subr.bf16.mxu0 0
        %1013 = vmatpush1.bf16.msra.mxu0 0
        %1014 = vmatprep.subr.bf16.mxu0 0
        %1015 = vmatpush1.bf16.msra.mxu0 0
        %1016 = vmatprep.subr.bf16.mxu0 0
        %1017 = vmatpush1.bf16.msra.mxu0 0
        %1018 = vmatprep.subr.bf16.mxu0 0
        %1019 = vmatpush1.bf16.msra.mxu0 0
        %1020 = vmatprep.subr.bf16.mxu0 0
        %1021 = vmatpush1.bf16.msra.mxu0 0
        %1022 = vmatprep.subr.bf16.mxu0 0
        %1023 = vmatpush1.bf16.msra.mxu0 0
        %1024 = vmatprep.subr.bf16.mxu0 0
        %1025 = vmatpush1.bf16.msra.mxu0 0
        %1026 = vmatprep.subr.bf16.mxu0 0
        %1027 = vmatpush1.bf16.msra.mxu0 0
        %1028 = vmatprep.subr.bf16.mxu0 0
        %1029 = vmatpush1.bf16.msra.mxu0 0
        %1030 = vmatprep.mubr.bf16.mxu0 0
        %1031 = vmatmul.mubr.bf16.gmra.mrb[0].mxu0 %v400
        %v1032 = vpop.f32.mrb[0].mxu0
        %v1033 = vadd.f32 0.0, %v1032
        %v1034 = vpop.f32.mrb[0].mxu0
        %v1035 = vpop.f32.mrb[0].mxu0
        %v1036 = vpop.f32.mrb[0].mxu0
        %1037 = vdwg.mxu0
        %v1038 = vpack.c.bf16 %v1033, %v1033
        %s1039 = scalar_lea.vmem %s333, 12 [#allocation4]
        %1040 = vst.msk [vmem:[%s1039] sm:$0xf] %vm443, %v1038
        %s1041 = scalar_lea.vmem %s5, 48
        %v1042 = vld [vmem:[%s1041] sm:$0xf]
        %v1043 = vld [vmem:[%s1041 + $0x4] sm:$0xf]
        %v1044 = vld [vmem:[%s1041 + $0x8] sm:$0xf]
        %v1045 = vld [vmem:[%s1041 + $0xc] sm:$0xf]
        %v1050 = vunpack.c.l.b16 %v1042
        %v1051 = vunpack.c.l.b16 %v1043
        %v1052 = vunpack.c.l.b16 %v1044
        %v1053 = vunpack.c.l.b16 %v1045
        %v1054 = vpack.c.b16 %v1051, %v1050
        %v1055 = vpack.c.b16 %v1053, %v1052
        %1058 = vmatprep.subr.bf16.mxu0 0
        %1059 = vmatpush1.bf16.msra.mxu0 %v1054
        %1060 = vmatprep.subr.bf16.mxu0 0
        %1061 = vmatpush1.bf16.msra.mxu0 %v1055
        %1062 = vmatprep.subr.bf16.mxu0 0
        %1063 = vmatpush1.bf16.msra.mxu0 0
        %1064 = vmatprep.subr.bf16.mxu0 0
        %1065 = vmatpush1.bf16.msra.mxu0 0
        %1066 = vmatprep.subr.bf16.mxu0 0
        %1067 = vmatpush1.bf16.msra.mxu0 0
        %1068 = vmatprep.subr.bf16.mxu0 0
        %1069 = vmatpush1.bf16.msra.mxu0 0
        %1070 = vmatprep.subr.bf16.mxu0 0
        %1071 = vmatpush1.bf16.msra.mxu0 0
        %1072 = vmatprep.subr.bf16.mxu0 0
        %1073 = vmatpush1.bf16.msra.mxu0 0
        %1074 = vmatprep.subr.bf16.mxu0 0
        %1075 = vmatpush1.bf16.msra.mxu0 0
        %1076 = vmatprep.subr.bf16.mxu0 0
        %1077 = vmatpush1.bf16.msra.mxu0 0
        %1078 = vmatprep.subr.bf16.mxu0 0
        %1079 = vmatpush1.bf16.msra.mxu0 0
        %1080 = vmatprep.subr.bf16.mxu0 0
        %1081 = vmatpush1.bf16.msra.mxu0 0
        %1082 = vmatprep.subr.bf16.mxu0 0
        %1083 = vmatpush1.bf16.msra.mxu0 0
        %1084 = vmatprep.subr.bf16.mxu0 0
        %1085 = vmatpush1.bf16.msra.mxu0 0
        %1086 = vmatprep.subr.bf16.mxu0 0
        %1087 = vmatpush1.bf16.msra.mxu0 0
        %1088 = vmatprep.subr.bf16.mxu0 0
        %1089 = vmatpush1.bf16.msra.mxu0 0
        %1090 = vmatprep.mubr.bf16.mxu0 0
        %1091 = vmatmul.mubr.bf16.gmra.mrb[0].mxu0 %v400
        %v1092 = vpop.f32.mrb[0].mxu0
        %v1093 = vadd.f32 0.0, %v1092
        %v1094 = vpop.f32.mrb[0].mxu0
        %v1095 = vpop.f32.mrb[0].mxu0
        %v1096 = vpop.f32.mrb[0].mxu0
        %1097 = vdwg.mxu0
        %v1098 = vpack.c.bf16 %v1093, %v1093
        %s1099 = scalar_lea.vmem %s340, 12 [#allocation6]
        %1100 = vst.msk [vmem:[%s1099] sm:$0xf] %vm443, %v1098
        %s1101 = sand.u32 %s181, 1
        %s1102 = scalar_lea.sflag [#allocation3], %s1101
        %s1103 = sand.u32 %s181, 1
        %s1104 = smul.addr %s1103, 16
        %s1105 = scalar_lea.vmem [#allocation2], %s1104
        %s1106 = sand.u32 %s26, 1
        %s1107 = scalar_lea.sflag [#allocation5], %s1106
        %s1108 = sand.u32 %s209, 1
        %s1109 = smul.addr %s1108, 16
        %s1110 = scalar_lea.vmem [#allocation4], %s1109
        %s1111 = sand.u32 %s26, 1
        %s1112 = scalar_lea.sflag [#allocation5], %s1111
        %s1113 = sand.u32 %s237, 1
        %s1114 = smul.addr %s1113, 16
        %s1115 = scalar_lea.vmem [#allocation6], %s1114
        // Predicated region
        $region45: #{tpu_custom_call.1} parent=43 // pred_check
          %p1116 = pneg %p191
        $region46: #{tpu_custom_call.1} parent=43 // pred_check_branch
          %1118 = sbr.rel (%p1116) target = $region48
        $region47: #{tpu_custom_call.1} parent=43 // pred_region
          %s1120 = ssub.s32 256, 256
          %1121 = vsyncadd %s1102, %s1120
          %s1122 = smul.addr %s30, 4
          %s1123 = sadd.s32 %s31, %s1122
          %s1124 = smul.addr %s1123, 64
          %s1125 = scalar_lea.hbm %s6, %s1124
          %s1126 = sshll.u32 %s1105, 4
          %s1127 = int_to_ptr.vmem [resolvable:$true] %s1126
          %1132 = dma.vmem_to_hbm [thread:$0]  %s1127, 256, %s1125, %s1102, 64, 64, 4
        $region48: #{tpu_custom_call.1} parent=43 // pred_fallthru
          _
        // Predicated region
        $region49: #{tpu_custom_call.1} parent=43 // pred_check
          %p1133 = pneg %p219
        $region50: #{tpu_custom_call.1} parent=43 // pred_check_branch
          %1135 = sbr.rel (%p1133) target = $region52
        $region51: #{tpu_custom_call.1} parent=43 // pred_region
          %s1137 = ssub.s32 256, 256
          %1138 = vsyncadd %s1107, %s1137
          %s1139 = smul.addr %s30, 4
          %s1140 = sadd.s32 %s31, %s1139
          %s1141 = smul.addr %s1140, 64
          %s1142 = scalar_lea.hbm %s7, %s1141
          %s1143 = sshll.u32 %s1110, 4
          %s1144 = int_to_ptr.vmem [resolvable:$true] %s1143
          %1149 = dma.vmem_to_hbm [thread:$0]  %s1144, 256, %s1142, %s1107, 64, 64, 4
        $region52: #{tpu_custom_call.1} parent=43 // pred_fallthru
          _
        // Predicated region
        $region53: #{tpu_custom_call.1} parent=43 // pred_check
          %p1150 = pneg %p247
        $region54: #{tpu_custom_call.1} parent=43 // pred_check_branch
          %1152 = sbr.rel (%p1150) target = $region56
        $region55: #{tpu_custom_call.1} parent=43 // pred_region
          %s1154 = ssub.s32 256, 256
          %1155 = vsyncadd %s1112, %s1154
          %s1156 = smul.addr %s30, 4
          %s1157 = sadd.s32 %s31, %s1156
          %s1158 = smul.addr %s1157, 64
          %s1159 = scalar_lea.hbm %s8, %s1158
          %s1160 = sshll.u32 %s1115, 4
          %s1161 = int_to_ptr.vmem [resolvable:$true] %s1160
          %1166 = dma.vmem_to_hbm [thread:$0]  %s1161, 256, %s1159, %s1112, 64, 64, 4
        $region56: #{tpu_custom_call.1} parent=43 // pred_fallthru
          _
      $region44: #{tpu_custom_call.1} parent=5 // pred_fallthru
        _
      %p1167 = scmp.le.s32.totalorder 2, %s21
      // Predicated region
      $region57: #{tpu_custom_call.1} parent=5 // pred_check
        %p1168 = pneg %p1167
      $region58: #{tpu_custom_call.1} parent=5 // pred_check_branch
        %1170 = sbr.rel (%p1168) target = $region60
      $region59: #{tpu_custom_call.1} parent=5 // pred_region
        %s1171 = ssub.s32 %s21, 2
        // Predicated region
        $region61: #{tpu_custom_call.1} parent=59 // pred_check
          %p1172 = pneg %p197
        $region62: #{tpu_custom_call.1} parent=59 // pred_check_branch
          %1174 = sbr.rel (%p1172) target = $region64
        $region63: #{tpu_custom_call.1} parent=59 // pred_region
          %s1175 = sand.u32 %s182, 1
          %s1176 = scalar_lea.sflag [#allocation3], %s1175
          %s1177 = sand.u32 %s182, 1
          %s1178 = smul.addr %s1177, 16
          %s1179 = scalar_lea.vmem [#allocation2], %s1178
          %1180 = dma.done %s1176, 256
        $region64: #{tpu_custom_call.1} parent=59 // pred_fallthru
          _
        // Predicated region
        $region65: #{tpu_custom_call.1} parent=59 // pred_check
          %p1181 = pneg %p225
        $region66: #{tpu_custom_call.1} parent=59 // pred_check_branch
          %1183 = sbr.rel (%p1181) target = $region68
        $region67: #{tpu_custom_call.1} parent=59 // pred_region
          %s1184 = sand.u32 %s27, 1
          %s1185 = scalar_lea.sflag [#allocation5], %s1184
          %s1186 = sand.u32 %s210, 1
          %s1187 = smul.addr %s1186, 16
          %s1188 = scalar_lea.vmem [#allocation4], %s1187
          %1189 = dma.done %s1185, 256
        $region68: #{tpu_custom_call.1} parent=59 // pred_fallthru
          _
        // Predicated region
        $region69: #{tpu_custom_call.1} parent=59 // pred_check
          %p1190 = pneg %p253
        $region70: #{tpu_custom_call.1} parent=59 // pred_check_branch
          %1192 = sbr.rel (%p1190) target = $region72
        $region71: #{tpu_custom_call.1} parent=59 // pred_region
          %s1193 = sand.u32 %s27, 1
          %s1194 = scalar_lea.sflag [#allocation5], %s1193
          %s1195 = sand.u32 %s238, 1
          %s1196 = smul.addr %s1195, 16
          %s1197 = scalar_lea.vmem [#allocation6], %s1196
          %1198 = dma.done %s1194, 256
        $region72: #{tpu_custom_call.1} parent=59 // pred_fallthru
          _
      $region60: #{tpu_custom_call.1} parent=5 // pred_fallthru
        _
    $region6: #{tpu_custom_call.1} parent=1 // loop_footer
      %s25 = sadd.s32 1, %s21
    $region7: #{tpu_custom_call.1} parent=1 // loop_footer_branch
      %20 = sbr.rel target = $region3
    $region8: #{tpu_custom_call.1} parent=1 // loop_exit
      _
    %1199 = vsyncpa [#allocation3], 1
    %s1200 = scalar_lea.sflag [#allocation3], 1
    %1201 = vsyncpa %s1200, 1
    %1202 = vsyncpa [#allocation5], 1
    %s1203 = scalar_lea.sflag [#allocation5], 1
    %1204 = vsyncpa %s1203, 1

</llo_original>
